<compile_context>
chip_gen: v6e
topology: v6e:2x2x1
jax: 0.10.0
libtpu: 0.0.40
codegen_flags: <defaults>
</compile_context>

<pallas_src>
import functools
import math

import jax
import jax.numpy as jnp
from jax.experimental import pallas as pl
from jax.experimental.pallas import tpu as pltpu


def _round_up(x, m):
    return ((x + m - 1) // m) * m


# ----------------------------------------------------------------------------
# Fused MLP kernel: all layers of one MLP in a single pallas_call.
# ----------------------------------------------------------------------------
def _fused_mlp_kernel(*refs, num_layers, acts, layer_norm, eps):
    # refs = x, (w0, b0), (w1, b1), ..., [gamma, beta], out
    x_ref = refs[0]
    idx = 1
    h = x_ref[...].astype(jnp.float32)
    for layer in range(num_layers):
        w = refs[idx][...]
        b = refs[idx + 1][...]          # (1, f_out) -> broadcasts over rows
        idx += 2
        h = jnp.dot(h, w, preferred_element_type=jnp.float32) + b
        act = acts[layer]
        if act == "relu":
            h = jnp.maximum(h, 0.0)
        elif act == "tanh":
            h = jnp.tanh(h)
        elif act is not None:
            raise NotImplementedError(f"Activation '{act}' not supported")
    if layer_norm:
        # LayerNorm folded into the epilogue (biased variance, torch semantics)
        gamma = refs[idx][...]
        beta = refs[idx + 1][...]
        idx += 2
        mean = jnp.mean(h, axis=-1, keepdims=True)
        var = jnp.mean((h - mean) * (h - mean), axis=-1, keepdims=True)
        h = (h - mean) * jax.lax.rsqrt(var + eps) * gamma + beta
    o_ref = refs[idx]
    o_ref[...] = h.astype(o_ref.dtype)


def fused_mlp(x, layers, acts, layer_norm_params=None, *, eps=1e-5,
              max_tile_rows=512):
    """Row-tiled fused MLP forward.  layers = [(W [in,out], b [out]), ...]."""
    n, f_in = x.shape
    f_out = layers[-1][0].shape[1]
    dtype = x.dtype

    # Row tile: multiple of 8 sublanes; whole (padded) row range divides evenly.
    tile = min(max_tile_rows, _round_up(n, 8))
    n_pad = _round_up(n, tile)
    if n_pad != n:
        x = jnp.pad(x, ((0, n_pad - n), (0, 0)))

    in_specs = [pl.BlockSpec((tile, f_in), lambda i: (i, 0))]
    inputs = [x]
    flops = 0
    transcendentals = 0
    param_bytes = 0
    for (w, b), act in zip(layers, acts):
        fi, fo = w.shape
        in_specs.append(pl.BlockSpec((fi, fo), lambda i: (0, 0)))   # resident
        in_specs.append(pl.BlockSpec((1, fo), lambda i: (0, 0)))    # resident
        inputs += [w, b.reshape(1, fo)]
        flops += 2 * n_pad * fi * fo + n_pad * fo
        if act == "tanh":
            transcendentals += n_pad * fo
        param_bytes += (w.size + b.size) * 4
    if layer_norm_params is not None:
        gamma, beta = layer_norm_params
        in_specs.append(pl.BlockSpec((1, f_out), lambda i: (0, 0)))
        in_specs.append(pl.BlockSpec((1, f_out), lambda i: (0, 0)))
        inputs += [gamma.reshape(1, f_out), beta.reshape(1, f_out)]
        param_bytes += 2 * f_out * 4

    # Explicit scoped-VMEM budget: double-buffered in/out tiles + params +
    # intermediates, with generous headroom (min 16 MiB fits every generation,
    # well under v7x's 64 MiB physical VMEM).
    widths = [f_in] + [w.shape[1] for w, _ in layers]
    inter_bytes = sum(tile * wd * 4 for wd in widths)
    need = 2 * (tile * f_in + tile * f_out) * 4 + 2 * param_bytes + inter_bytes
    vmem_limit = int(min(max(4 * need, 16 * 1024 * 1024), 100 * 1024 * 1024))

    out = pl.pallas_call(
        functools.partial(
            _fused_mlp_kernel,
            num_layers=len(layers),
            acts=tuple(acts),
            layer_norm=layer_norm_params is not None,
            eps=eps,
        ),
        out_shape=jax.ShapeDtypeStruct((n_pad, f_out), dtype),
        grid=(n_pad // tile,),
        in_specs=in_specs,
        out_specs=pl.BlockSpec((tile, f_out), lambda i: (i, 0)),
        compiler_params=pltpu.CompilerParams(
            dimension_semantics=("parallel",),   # shard row tiles across TCs (v7x)
            vmem_limit_bytes=vmem_limit,
        ),
        cost_estimate=pl.CostEstimate(
            flops=flops,
            transcendentals=transcendentals,
            bytes_accessed=4 * (n_pad * f_in + n_pad * f_out) + param_bytes,
        ),
    )(*inputs)
    return out[:n] if n_pad != n else out


# ----------------------------------------------------------------------------
# MLP module (parameters in plain JAX, compute in the fused Pallas kernel)
# ----------------------------------------------------------------------------
class MLP:
    def __init__(self, width, layer_norm=False, activation="relu",
                 activate_final=False, *, key):
        width = [w for w in width if w > 0]
        self.identity = (not width) or (len(width) < 2)
        self.layers = []      # list of (W [in,out], b [out])
        self.acts = []        # per-layer activation or None
        self.layer_norm = None
        if self.identity:
            return
        for k in range(len(width) - 1):
            fan_in, fan_out = width[k], width[k + 1]
            key, kw, kb = jax.random.split(key, 3)
            # torch.nn.Linear-style init: U(-1/sqrt(in), 1/sqrt(in))
            bound = 1.0 / math.sqrt(fan_in)
            w = jax.random.uniform(kw, (fan_in, fan_out), jnp.float32, -bound, bound)
            b = jax.random.uniform(kb, (fan_out,), jnp.float32, -bound, bound)
            act = activation if (k != len(width) - 2 or activate_final) else None
            if act is not None and act not in ("relu", "tanh"):
                raise NotImplementedError(f"Activation '{act}' not supported")
            self.layers.append((w, b))
            self.acts.append(act)
        if layer_norm:
            f = width[-1]
            self.layer_norm = (jnp.ones((f,), jnp.float32),
                               jnp.zeros((f,), jnp.float32))

    def __call__(self, x):
        if self.identity:
            return x
        return fused_mlp(x, self.layers, self.acts, self.layer_norm)

    def reference(self, x):   # plain-JAX reference for verification
        if self.identity:
            return x
        for (w, b), act in zip(self.layers, self.acts):
            x = x @ w + b
            if act == "relu":
                x = jnp.maximum(x, 0.0)
            elif act == "tanh":
                x = jnp.tanh(x)
        if self.layer_norm is not None:
            gamma, beta = self.layer_norm
            mean = jnp.mean(x, axis=-1, keepdims=True)
            var = jnp.mean((x - mean) ** 2, axis=-1, keepdims=True)
            x = (x - mean) * jax.lax.rsqrt(var + 1e-5) * gamma + beta
        return x


# ----------------------------------------------------------------------------
# GraphNet / MP_Block (graph plumbing in JAX, MLPs via the Pallas kernel)
# ----------------------------------------------------------------------------
# TODO(synk): the data-dependent gather (x[row], x[col]) and the segment
# aggregation (scatter sum/mean/max over edges) stay in plain JAX; a Pallas
# version would need scalar-prefetch + pl.Element row indexing for the gather
# and a one-hot-matmul or sorted-segments scheme for the scatter.
def _aggregate(edge_emb, row, num_nodes, kind):
    if kind == "sum":
        return jax.ops.segment_sum(edge_emb, row, num_segments=num_nodes)
    if kind == "mean":
        s = jax.ops.segment_sum(edge_emb, row, num_segments=num_nodes)
        cnt = jax.ops.segment_sum(jnp.ones((row.shape[0], 1), edge_emb.dtype),
                                  row, num_segments=num_nodes)
        return s / jnp.maximum(cnt, 1.0)
    if kind == "max":
        m = jax.ops.segment_max(edge_emb, row, num_segments=num_nodes)
        return jnp.where(jnp.isfinite(m), m, 0.0)   # empty segments -> 0
    raise NotImplementedError(f"Aggregation '{kind}' not implemented")


class GraphNet:
    def __init__(self, node_features, edge_features, global_features, hidden_size,
                 aggregate, activation, skip_connection, edge_features_out, *, key):
        if aggregate not in ("sum", "mean", "max"):
            raise NotImplementedError(f"Aggregation '{aggregate}' not implemented")
        self.aggregate = aggregate
        edge_input_dim = (edge_features + (1 if skip_connection else 0)
                          + 2 * node_features + global_features)
        node_input_dim = node_features + edge_features_out + global_features
        k1, k2 = jax.random.split(key)
        self.edge_block = MLP([edge_input_dim, hidden_size, edge_features_out],
                              activation=activation, key=k1)
        self.node_block = MLP([node_input_dim, hidden_size, node_features],
                              activation=activation, key=k2)

    def _forward(self, x, edge_index, edge_attr, g, use_pallas):
        row, col = edge_index[0], edge_index[1]
        num_edges = edge_attr.shape[0]
        parts = []
        if g is not None:
            parts.append(jnp.broadcast_to(g, (num_edges, g.shape[-1])))
        parts += [x[row], x[col], edge_attr]
        edge_inputs = jnp.concatenate(parts, axis=1)
        edge_embedding = (self.edge_block(edge_inputs) if use_pallas
                          else self.edge_block.reference(edge_inputs))
        aggregation = _aggregate(edge_embedding, row, x.shape[0], self.aggregate)
        parts = []
        if g is not None:
            parts.append(jnp.broadcast_to(g, (x.shape[0], g.shape[-1])))
        parts += [x, aggregation]
        node_inputs = jnp.concatenate(parts, axis=1)
        node_embeddings = (self.node_block(node_inputs) if use_pallas
                           else self.node_block.reference(node_inputs))
        return edge_embedding, node_embeddings, None

    def __call__(self, x, edge_index, edge_attr, g=None):
        return self._forward(x, edge_index, edge_attr, g, use_pallas=True)

    def reference(self, x, edge_index, edge_attr, g=None):
        return self._forward(x, edge_index, edge_attr, g, use_pallas=False)


class MP_Block:
    def __init__(self, skip_connections, first, last, edge_features, node_features,
                 global_features, hidden_size, activation, aggregate, *, key):
        aggr_list = (aggregate if isinstance(aggregate, list) and len(aggregate) == 2
                     else [aggregate, aggregate])
        edge_feat_in = 1 if first else edge_features
        edge_feat_out = 1 if last else edge_features
        k1, k2 = jax.random.split(key)
        self.l1 = GraphNet(node_features=node_features, edge_features=edge_feat_in,
                           global_features=global_features, hidden_size=hidden_size,
                           aggregate=aggr_list[0], activation=activation,
                           skip_connection=(not first) and skip_connections,
                           edge_features_out=edge_features, key=k1)
        self.l2 = GraphNet(node_features=node_features, edge_features=edge_features,
                           global_features=global_features, hidden_size=hidden_size,
                           aggregate=aggr_list[1], activation=activation,
                           skip_connection=False, edge_features_out=edge_feat_out,
                           key=k2)

    def __call__(self, node_embedding, edge_index, edge_embedding, global_features):
        edge_embedding, node_embedding, _ = self.l1(
            node_embedding, edge_index, edge_embedding, g=global_features)
        edge_index_T = jnp.stack([edge_index[1], edge_index[0]], axis=0)
        edge_embedding, node_embedding, _ = self.l2(
            node_embedding, edge_index_T, edge_embedding, g=global_features)
        return edge_embedding, node_embedding, global_features

    def reference(self, node_embedding, edge_index, edge_embedding, global_features):
        edge_embedding, node_embedding, _ = self.l1.reference(
            node_embedding, edge_index, edge_embedding, g=global_features)
        edge_index_T = jnp.stack([edge_index[1], edge_index[0]], axis=0)
        edge_embedding, node_embedding, _ = self.l2.reference(
            node_embedding, edge_index_T, edge_embedding, g=global_features)
        return edge_embedding, node_embedding, global_features


if __name__ == "__main__":
    key = jax.random.PRNGKey(0)
    kx, ke, kg, kp, ki1, ki2 = jax.random.split(key, 6)

    num_nodes, num_edges = 16, 48
    node_features, edge_features, global_features, hidden = 8, 8, 2, 32

    node_emb = jax.random.normal(kx, (num_nodes, node_features), jnp.float32)
    edge_emb = jax.random.normal(ke, (num_edges, 1), jnp.float32)      # first=True -> 1 feat
    g = jax.random.normal(kg, (1, global_features), jnp.float32)

    # Edge index: one self-loop per node + random extras (every node has edges).
    base = jnp.arange(num_nodes, dtype=jnp.int32)
    extra_src = jax.random.randint(ki1, (num_edges - num_nodes,), 0, num_nodes, dtype=jnp.int32)
    extra_dst = jax.random.randint(ki2, (num_edges - num_nodes,), 0, num_nodes, dtype=jnp.int32)
    edge_index = jnp.stack([jnp.concatenate([base, extra_src]),
                            jnp.concatenate([base, extra_dst])], axis=0)

    block = MP_Block(skip_connections=False, first=True, last=True,
                     edge_features=edge_features, node_features=node_features,
                     global_features=global_features, hidden_size=hidden,
                     activation="relu", aggregate="mean", key=kp)

    fwd = jax.jit(block.__call__)
    e_out, n_out, g_out = jax.block_until_ready(fwd(node_emb, edge_index, edge_emb, g))
    e_ref, n_ref, _ = block.reference(node_emb, edge_index, edge_emb, g)

    assert e_out.shape == (num_edges, 1)
    assert n_out.shape == (num_nodes, node_features)
    assert jnp.allclose(e_out, e_ref, atol=1e-3, rtol=1e-3)
    assert jnp.allclose(n_out, n_ref, atol=1e-3, rtol=1e-3)

    print("KERNEL_OK")
</pallas_src>

<mosaic_0001>
module attributes {stable_mosaic.version = 11 : i64} {
  func.func private @main(%arg0: i32) attributes {dimension_semantics = [#tpu.dimension_semantics<core_parallel>], iteration_bounds = array<i64: 2>, tpu.core_type = #tpu.core_type<sc_scalar_subcore>, window_params = []} {
    return
  }
}

module attributes {stable_mosaic.version = 11 : i64} {
  func.func private @main(%arg0: i32) attributes {dimension_semantics = [#tpu.dimension_semantics<core_parallel>], iteration_bounds = array<i64: 2>, tpu.core_type = #tpu.core_type<sc_scalar_subcore>, window_params = []} {
    return
  }
}

module attributes {stable_mosaic.version = 11 : i64} {
  func.func @_fused_mlp_kernel(%arg0: i32, %arg1: memref<48x19xf32, #tpu.memory_space<vmem>>, %arg2: memref<19x32xf32, #tpu.memory_space<vmem>>, %arg3: memref<1x32xf32, #tpu.memory_space<vmem>>, %arg4: memref<32x8xf32, #tpu.memory_space<vmem>>, %arg5: memref<1x8xf32, #tpu.memory_space<vmem>>, %arg6: memref<48x8xf32, #tpu.memory_space<vmem>>) attributes {dimension_semantics = [#tpu.dimension_semantics<parallel>], iteration_bounds = array<i64: 1>, scalar_prefetch = 0 : i64, scratch_operands = 0 : i64, tpu.core_type = #tpu.core_type<tc>, window_params = [{transform_indices = @transform_0, window_bounds = array<i64: 48, 19>}, {pipeline_mode = #tpu.pipeline_mode<synchronous>, transform_indices = @transform_1, window_bounds = array<i64: 19, 32>}, {pipeline_mode = #tpu.pipeline_mode<synchronous>, transform_indices = @transform_2, window_bounds = array<i64: 1, 32>}, {pipeline_mode = #tpu.pipeline_mode<synchronous>, transform_indices = @transform_3, window_bounds = array<i64: 32, 8>}, {pipeline_mode = #tpu.pipeline_mode<synchronous>, transform_indices = @transform_4, window_bounds = array<i64: 1, 8>}, {transform_indices = @transform_5, window_bounds = array<i64: 48, 8>}]} {
    %c0 = arith.constant 0 : index
    %c0_0 = arith.constant 0 : index
    %0 = vector.load %arg1[%c0, %c0_0] : memref<48x19xf32, #tpu.memory_space<vmem>>, vector<48x19xf32>
    %c0_1 = arith.constant 0 : index
    %c0_2 = arith.constant 0 : index
    %1 = vector.load %arg2[%c0_1, %c0_2] : memref<19x32xf32, #tpu.memory_space<vmem>>, vector<19x32xf32>
    %c0_3 = arith.constant 0 : index
    %c0_4 = arith.constant 0 : index
    %2 = vector.load %arg3[%c0_3, %c0_4] : memref<1x32xf32, #tpu.memory_space<vmem>>, vector<1x32xf32>
    %cst = arith.constant dense<0.000000e+00> : vector<48x32xf32>
    %3 = tpu.matmul %0, %1, %cst {dimension_numbers = #tpu.dot_dimension_numbers<[1], [0], [0], [1], [0, 0, 1, 1], [], []>} : vector<48x19xf32>, vector<19x32xf32>, vector<48x32xf32> -> vector<48x32xf32>
    %4 = vector.broadcast %2 : vector<1x32xf32> to vector<48x32xf32>
    %5 = arith.addf %3, %4 : vector<48x32xf32>
    %cst_5 = arith.constant 0.000000e+00 : f32
    %6 = vector.broadcast %cst_5 : f32 to vector<48x32xf32>
    %7 = arith.maximumf %5, %6 : vector<48x32xf32>
    %c0_6 = arith.constant 0 : index
    %c0_7 = arith.constant 0 : index
    %8 = vector.load %arg4[%c0_6, %c0_7] : memref<32x8xf32, #tpu.memory_space<vmem>>, vector<32x8xf32>
    %c0_8 = arith.constant 0 : index
    %c0_9 = arith.constant 0 : index
    %9 = vector.load %arg5[%c0_8, %c0_9] : memref<1x8xf32, #tpu.memory_space<vmem>>, vector<1x8xf32>
    %cst_10 = arith.constant dense<0.000000e+00> : vector<48x8xf32>
    %10 = tpu.matmul %7, %8, %cst_10 {dimension_numbers = #tpu.dot_dimension_numbers<[1], [0], [0], [1], [0, 0, 1, 1], [], []>} : vector<48x32xf32>, vector<32x8xf32>, vector<48x8xf32> -> vector<48x8xf32>
    %11 = vector.broadcast %9 : vector<1x8xf32> to vector<48x8xf32>
    %12 = arith.addf %10, %11 : vector<48x8xf32>
    %c0_11 = arith.constant 0 : index
    %c0_12 = arith.constant 0 : index
    %13 = vector.load %arg6[%c0_11, %c0_12] : memref<48x8xf32, #tpu.memory_space<vmem>>, vector<48x8xf32>
    tpu.vector_store %arg6[%c0_11, %c0_12], %12 {strides = array<i32>} : memref<48x8xf32, #tpu.memory_space<vmem>>, vector<48x8xf32>,
    return
  }
  func.func @transform_0(%arg0: i32) -> (i32, i32) {
    %c0_i32 = arith.constant 0 : i32
    %c0_i32_0 = arith.constant 0 : i32
    return %arg0, %c0_i32 : i32, i32
  }
  func.func @transform_1(%arg0: i32) -> (i32, i32) {
    %c0_i32 = arith.constant 0 : i32
    %c0_i32_0 = arith.constant 0 : i32
    %c0_i32_1 = arith.constant 0 : i32
    return %c0_i32, %c0_i32_0 : i32, i32
  }
  func.func @transform_2(%arg0: i32) -> (i32, i32) {
    %c0_i32 = arith.constant 0 : i32
    %c0_i32_0 = arith.constant 0 : i32
    %c0_i32_1 = arith.constant 0 : i32
    return %c0_i32, %c0_i32_0 : i32, i32
  }
  func.func @transform_3(%arg0: i32) -> (i32, i32) {
    %c0_i32 = arith.constant 0 : i32
    %c0_i32_0 = arith.constant 0 : i32
    %c0_i32_1 = arith.constant 0 : i32
    return %c0_i32, %c0_i32_0 : i32, i32
  }
  func.func @transform_4(%arg0: i32) -> (i32, i32) {
    %c0_i32 = arith.constant 0 : i32
    %c0_i32_0 = arith.constant 0 : i32
    %c0_i32_1 = arith.constant 0 : i32
    return %c0_i32, %c0_i32_0 : i32, i32
  }
  func.func @transform_5(%arg0: i32) -> (i32, i32) {
    %c0_i32 = arith.constant 0 : i32
    %c0_i32_0 = arith.constant 0 : i32
    return %arg0, %c0_i32 : i32, i32
  }
}

module attributes {stable_mosaic.version = 11 : i64} {
  func.func @_fused_mlp_kernel(%arg0: i32, %arg1: memref<16x18xf32, #tpu.memory_space<vmem>>, %arg2: memref<18x32xf32, #tpu.memory_space<vmem>>, %arg3: memref<1x32xf32, #tpu.memory_space<vmem>>, %arg4: memref<32x8xf32, #tpu.memory_space<vmem>>, %arg5: memref<1x8xf32, #tpu.memory_space<vmem>>, %arg6: memref<16x8xf32, #tpu.memory_space<vmem>>) attributes {dimension_semantics = [#tpu.dimension_semantics<parallel>], iteration_bounds = array<i64: 1>, scalar_prefetch = 0 : i64, scratch_operands = 0 : i64, tpu.core_type = #tpu.core_type<tc>, window_params = [{transform_indices = @transform_0, window_bounds = array<i64: 16, 18>}, {pipeline_mode = #tpu.pipeline_mode<synchronous>, transform_indices = @transform_1, window_bounds = array<i64: 18, 32>}, {pipeline_mode = #tpu.pipeline_mode<synchronous>, transform_indices = @transform_2, window_bounds = array<i64: 1, 32>}, {pipeline_mode = #tpu.pipeline_mode<synchronous>, transform_indices = @transform_3, window_bounds = array<i64: 32, 8>}, {pipeline_mode = #tpu.pipeline_mode<synchronous>, transform_indices = @transform_4, window_bounds = array<i64: 1, 8>}, {transform_indices = @transform_5, window_bounds = array<i64: 16, 8>}]} {
    %c0 = arith.constant 0 : index
    %c0_0 = arith.constant 0 : index
    %0 = vector.load %arg1[%c0, %c0_0] : memref<16x18xf32, #tpu.memory_space<vmem>>, vector<16x18xf32>
    %c0_1 = arith.constant 0 : index
    %c0_2 = arith.constant 0 : index
    %1 = vector.load %arg2[%c0_1, %c0_2] : memref<18x32xf32, #tpu.memory_space<vmem>>, vector<18x32xf32>
    %c0_3 = arith.constant 0 : index
    %c0_4 = arith.constant 0 : index
    %2 = vector.load %arg3[%c0_3, %c0_4] : memref<1x32xf32, #tpu.memory_space<vmem>>, vector<1x32xf32>
    %cst = arith.constant dense<0.000000e+00> : vector<16x32xf32>
    %3 = tpu.matmul %0, %1, %cst {dimension_numbers = #tpu.dot_dimension_numbers<[1], [0], [0], [1], [0, 0, 1, 1], [], []>} : vector<16x18xf32>, vector<18x32xf32>, vector<16x32xf32> -> vector<16x32xf32>
    %4 = vector.broadcast %2 : vector<1x32xf32> to vector<16x32xf32>
    %5 = arith.addf %3, %4 : vector<16x32xf32>
    %cst_5 = arith.constant 0.000000e+00 : f32
    %6 = vector.broadcast %cst_5 : f32 to vector<16x32xf32>
    %7 = arith.maximumf %5, %6 : vector<16x32xf32>
    %c0_6 = arith.constant 0 : index
    %c0_7 = arith.constant 0 : index
    %8 = vector.load %arg4[%c0_6, %c0_7] : memref<32x8xf32, #tpu.memory_space<vmem>>, vector<32x8xf32>
    %c0_8 = arith.constant 0 : index
    %c0_9 = arith.constant 0 : index
    %9 = vector.load %arg5[%c0_8, %c0_9] : memref<1x8xf32, #tpu.memory_space<vmem>>, vector<1x8xf32>
    %cst_10 = arith.constant dense<0.000000e+00> : vector<16x8xf32>
    %10 = tpu.matmul %7, %8, %cst_10 {dimension_numbers = #tpu.dot_dimension_numbers<[1], [0], [0], [1], [0, 0, 1, 1], [], []>} : vector<16x32xf32>, vector<32x8xf32>, vector<16x8xf32> -> vector<16x8xf32>
    %11 = vector.broadcast %9 : vector<1x8xf32> to vector<16x8xf32>
    %12 = arith.addf %10, %11 : vector<16x8xf32>
    %c0_11 = arith.constant 0 : index
    %c0_12 = arith.constant 0 : index
    %13 = vector.load %arg6[%c0_11, %c0_12] : memref<16x8xf32, #tpu.memory_space<vmem>>, vector<16x8xf32>
    tpu.vector_store %arg6[%c0_11, %c0_12], %12 {strides = array<i32>} : memref<16x8xf32, #tpu.memory_space<vmem>>, vector<16x8xf32>,
    return
  }
  func.func @transform_0(%arg0: i32) -> (i32, i32) {
    %c0_i32 = arith.constant 0 : i32
    %c0_i32_0 = arith.constant 0 : i32
    return %arg0, %c0_i32 : i32, i32
  }
  func.func @transform_1(%arg0: i32) -> (i32, i32) {
    %c0_i32 = arith.constant 0 : i32
    %c0_i32_0 = arith.constant 0 : i32
    %c0_i32_1 = arith.constant 0 : i32
    return %c0_i32, %c0_i32_0 : i32, i32
  }
  func.func @transform_2(%arg0: i32) -> (i32, i32) {
    %c0_i32 = arith.constant 0 : i32
    %c0_i32_0 = arith.constant 0 : i32
    %c0_i32_1 = arith.constant 0 : i32
    return %c0_i32, %c0_i32_0 : i32, i32
  }
  func.func @transform_3(%arg0: i32) -> (i32, i32) {
    %c0_i32 = arith.constant 0 : i32
    %c0_i32_0 = arith.constant 0 : i32
    %c0_i32_1 = arith.constant 0 : i32
    return %c0_i32, %c0_i32_0 : i32, i32
  }
  func.func @transform_4(%arg0: i32) -> (i32, i32) {
    %c0_i32 = arith.constant 0 : i32
    %c0_i32_0 = arith.constant 0 : i32
    %c0_i32_1 = arith.constant 0 : i32
    return %c0_i32, %c0_i32_0 : i32, i32
  }
  func.func @transform_5(%arg0: i32) -> (i32, i32) {
    %c0_i32 = arith.constant 0 : i32
    %c0_i32_0 = arith.constant 0 : i32
    return %arg0, %c0_i32 : i32, i32
  }
}

module attributes {stable_mosaic.version = 11 : i64} {
  func.func @_fused_mlp_kernel(%arg0: i32, %arg1: memref<48x26xf32, #tpu.memory_space<vmem>>, %arg2: memref<26x32xf32, #tpu.memory_space<vmem>>, %arg3: memref<1x32xf32, #tpu.memory_space<vmem>>, %arg4: memref<32x1xf32, #tpu.memory_space<vmem>>, %arg5: memref<1x1xf32, #tpu.memory_space<vmem>>, %arg6: memref<48x1xf32, #tpu.memory_space<vmem>>) attributes {dimension_semantics = [#tpu.dimension_semantics<parallel>], iteration_bounds = array<i64: 1>, scalar_prefetch = 0 : i64, scratch_operands = 0 : i64, tpu.core_type = #tpu.core_type<tc>, window_params = [{transform_indices = @transform_0, window_bounds = array<i64: 48, 26>}, {pipeline_mode = #tpu.pipeline_mode<synchronous>, transform_indices = @transform_1, window_bounds = array<i64: 26, 32>}, {pipeline_mode = #tpu.pipeline_mode<synchronous>, transform_indices = @transform_2, window_bounds = array<i64: 1, 32>}, {pipeline_mode = #tpu.pipeline_mode<synchronous>, transform_indices = @transform_3, window_bounds = array<i64: 32, 1>}, {pipeline_mode = #tpu.pipeline_mode<synchronous>, transform_indices = @transform_4, window_bounds = array<i64: 1, 1>}, {transform_indices = @transform_5, window_bounds = array<i64: 48, 1>}]} {
    %c0 = arith.constant 0 : index
    %c0_0 = arith.constant 0 : index
    %0 = vector.load %arg1[%c0, %c0_0] : memref<48x26xf32, #tpu.memory_space<vmem>>, vector<48x26xf32>
    %c0_1 = arith.constant 0 : index
    %c0_2 = arith.constant 0 : index
    %1 = vector.load %arg2[%c0_1, %c0_2] : memref<26x32xf32, #tpu.memory_space<vmem>>, vector<26x32xf32>
    %c0_3 = arith.constant 0 : index
    %c0_4 = arith.constant 0 : index
    %2 = vector.load %arg3[%c0_3, %c0_4] : memref<1x32xf32, #tpu.memory_space<vmem>>, vector<1x32xf32>
    %cst = arith.constant dense<0.000000e+00> : vector<48x32xf32>
    %3 = tpu.matmul %0, %1, %cst {dimension_numbers = #tpu.dot_dimension_numbers<[1], [0], [0], [1], [0, 0, 1, 1], [], []>} : vector<48x26xf32>, vector<26x32xf32>, vector<48x32xf32> -> vector<48x32xf32>
    %4 = vector.broadcast %2 : vector<1x32xf32> to vector<48x32xf32>
    %5 = arith.addf %3, %4 : vector<48x32xf32>
    %cst_5 = arith.constant 0.000000e+00 : f32
    %6 = vector.broadcast %cst_5 : f32 to vector<48x32xf32>
    %7 = arith.maximumf %5, %6 : vector<48x32xf32>
    %c0_6 = arith.constant 0 : index
    %c0_7 = arith.constant 0 : index
    %8 = vector.load %arg4[%c0_6, %c0_7] : memref<32x1xf32, #tpu.memory_space<vmem>>, vector<32x1xf32>
    %c0_8 = arith.constant 0 : index
    %c0_9 = arith.constant 0 : index
    %9 = vector.load %arg5[%c0_8, %c0_9] : memref<1x1xf32, #tpu.memory_space<vmem>>, vector<1x1xf32>
    %cst_10 = arith.constant dense<0.000000e+00> : vector<48x1xf32>
    %10 = tpu.matmul %7, %8, %cst_10 {dimension_numbers = #tpu.dot_dimension_numbers<[1], [0], [0], [1], [0, 0, 1, 1], [], []>} : vector<48x32xf32>, vector<32x1xf32>, vector<48x1xf32> -> vector<48x1xf32>
    %11 = vector.broadcast %9 : vector<1x1xf32> to vector<48x1xf32>
    %12 = arith.addf %10, %11 : vector<48x1xf32>
    %c0_11 = arith.constant 0 : index
    %c0_12 = arith.constant 0 : index
    %13 = vector.load %arg6[%c0_11, %c0_12] : memref<48x1xf32, #tpu.memory_space<vmem>>, vector<48x1xf32>
    tpu.vector_store %arg6[%c0_11, %c0_12], %12 {strides = array<i32>} : memref<48x1xf32, #tpu.memory_space<vmem>>, vector<48x1xf32>,
    return
  }
  func.func @transform_0(%arg0: i32) -> (i32, i32) {
    %c0_i32 = arith.constant 0 : i32
    %c0_i32_0 = arith.constant 0 : i32
    return %arg0, %c0_i32 : i32, i32
  }
  func.func @transform_1(%arg0: i32) -> (i32, i32) {
    %c0_i32 = arith.constant 0 : i32
    %c0_i32_0 = arith.constant 0 : i32
    %c0_i32_1 = arith.constant 0 : i32
    return %c0_i32, %c0_i32_0 : i32, i32
  }
  func.func @transform_2(%arg0: i32) -> (i32, i32) {
    %c0_i32 = arith.constant 0 : i32
    %c0_i32_0 = arith.constant 0 : i32
    %c0_i32_1 = arith.constant 0 : i32
    return %c0_i32, %c0_i32_0 : i32, i32
  }
  func.func @transform_3(%arg0: i32) -> (i32, i32) {
    %c0_i32 = arith.constant 0 : i32
    %c0_i32_0 = arith.constant 0 : i32
    %c0_i32_1 = arith.constant 0 : i32
    return %c0_i32, %c0_i32_0 : i32, i32
  }
  func.func @transform_4(%arg0: i32) -> (i32, i32) {
    %c0_i32 = arith.constant 0 : i32
    %c0_i32_0 = arith.constant 0 : i32
    %c0_i32_1 = arith.constant 0 : i32
    return %c0_i32, %c0_i32_0 : i32, i32
  }
  func.func @transform_5(%arg0: i32) -> (i32, i32) {
    %c0_i32 = arith.constant 0 : i32
    %c0_i32_0 = arith.constant 0 : i32
    return %arg0, %c0_i32 : i32, i32
  }
}

module attributes {stable_mosaic.version = 11 : i64} {
  func.func @_fused_mlp_kernel(%arg0: i32, %arg1: memref<16x11xf32, #tpu.memory_space<vmem>>, %arg2: memref<11x32xf32, #tpu.memory_space<vmem>>, %arg3: memref<1x32xf32, #tpu.memory_space<vmem>>, %arg4: memref<32x8xf32, #tpu.memory_space<vmem>>, %arg5: memref<1x8xf32, #tpu.memory_space<vmem>>, %arg6: memref<16x8xf32, #tpu.memory_space<vmem>>) attributes {dimension_semantics = [#tpu.dimension_semantics<parallel>], iteration_bounds = array<i64: 1>, scalar_prefetch = 0 : i64, scratch_operands = 0 : i64, tpu.core_type = #tpu.core_type<tc>, window_params = [{transform_indices = @transform_0, window_bounds = array<i64: 16, 11>}, {pipeline_mode = #tpu.pipeline_mode<synchronous>, transform_indices = @transform_1, window_bounds = array<i64: 11, 32>}, {pipeline_mode = #tpu.pipeline_mode<synchronous>, transform_indices = @transform_2, window_bounds = array<i64: 1, 32>}, {pipeline_mode = #tpu.pipeline_mode<synchronous>, transform_indices = @transform_3, window_bounds = array<i64: 32, 8>}, {pipeline_mode = #tpu.pipeline_mode<synchronous>, transform_indices = @transform_4, window_bounds = array<i64: 1, 8>}, {transform_indices = @transform_5, window_bounds = array<i64: 16, 8>}]} {
    %c0 = arith.constant 0 : index
    %c0_0 = arith.constant 0 : index
    %0 = vector.load %arg1[%c0, %c0_0] : memref<16x11xf32, #tpu.memory_space<vmem>>, vector<16x11xf32>
    %c0_1 = arith.constant 0 : index
    %c0_2 = arith.constant 0 : index
    %1 = vector.load %arg2[%c0_1, %c0_2] : memref<11x32xf32, #tpu.memory_space<vmem>>, vector<11x32xf32>
    %c0_3 = arith.constant 0 : index
    %c0_4 = arith.constant 0 : index
    %2 = vector.load %arg3[%c0_3, %c0_4] : memref<1x32xf32, #tpu.memory_space<vmem>>, vector<1x32xf32>
    %cst = arith.constant dense<0.000000e+00> : vector<16x32xf32>
    %3 = tpu.matmul %0, %1, %cst {dimension_numbers = #tpu.dot_dimension_numbers<[1], [0], [0], [1], [0, 0, 1, 1], [], []>} : vector<16x11xf32>, vector<11x32xf32>, vector<16x32xf32> -> vector<16x32xf32>
    %4 = vector.broadcast %2 : vector<1x32xf32> to vector<16x32xf32>
    %5 = arith.addf %3, %4 : vector<16x32xf32>
    %cst_5 = arith.constant 0.000000e+00 : f32
    %6 = vector.broadcast %cst_5 : f32 to vector<16x32xf32>
    %7 = arith.maximumf %5, %6 : vector<16x32xf32>
    %c0_6 = arith.constant 0 : index
    %c0_7 = arith.constant 0 : index
    %8 = vector.load %arg4[%c0_6, %c0_7] : memref<32x8xf32, #tpu.memory_space<vmem>>, vector<32x8xf32>
    %c0_8 = arith.constant 0 : index
    %c0_9 = arith.constant 0 : index
    %9 = vector.load %arg5[%c0_8, %c0_9] : memref<1x8xf32, #tpu.memory_space<vmem>>, vector<1x8xf32>
    %cst_10 = arith.constant dense<0.000000e+00> : vector<16x8xf32>
    %10 = tpu.matmul %7, %8, %cst_10 {dimension_numbers = #tpu.dot_dimension_numbers<[1], [0], [0], [1], [0, 0, 1, 1], [], []>} : vector<16x32xf32>, vector<32x8xf32>, vector<16x8xf32> -> vector<16x8xf32>
    %11 = vector.broadcast %9 : vector<1x8xf32> to vector<16x8xf32>
    %12 = arith.addf %10, %11 : vector<16x8xf32>
    %c0_11 = arith.constant 0 : index
    %c0_12 = arith.constant 0 : index
    %13 = vector.load %arg6[%c0_11, %c0_12] : memref<16x8xf32, #tpu.memory_space<vmem>>, vector<16x8xf32>
    tpu.vector_store %arg6[%c0_11, %c0_12], %12 {strides = array<i32>} : memref<16x8xf32, #tpu.memory_space<vmem>>, vector<16x8xf32>,
    return
  }
  func.func @transform_0(%arg0: i32) -> (i32, i32) {
    %c0_i32 = arith.constant 0 : i32
    %c0_i32_0 = arith.constant 0 : i32
    return %arg0, %c0_i32 : i32, i32
  }
  func.func @transform_1(%arg0: i32) -> (i32, i32) {
    %c0_i32 = arith.constant 0 : i32
    %c0_i32_0 = arith.constant 0 : i32
    %c0_i32_1 = arith.constant 0 : i32
    return %c0_i32, %c0_i32_0 : i32, i32
  }
  func.func @transform_2(%arg0: i32) -> (i32, i32) {
    %c0_i32 = arith.constant 0 : i32
    %c0_i32_0 = arith.constant 0 : i32
    %c0_i32_1 = arith.constant 0 : i32
    return %c0_i32, %c0_i32_0 : i32, i32
  }
  func.func @transform_3(%arg0: i32) -> (i32, i32) {
    %c0_i32 = arith.constant 0 : i32
    %c0_i32_0 = arith.constant 0 : i32
    %c0_i32_1 = arith.constant 0 : i32
    return %c0_i32, %c0_i32_0 : i32, i32
  }
  func.func @transform_4(%arg0: i32) -> (i32, i32) {
    %c0_i32 = arith.constant 0 : i32
    %c0_i32_0 = arith.constant 0 : i32
    %c0_i32_1 = arith.constant 0 : i32
    return %c0_i32, %c0_i32_0 : i32, i32
  }
  func.func @transform_5(%arg0: i32) -> (i32, i32) {
    %c0_i32 = arith.constant 0 : i32
    %c0_i32_0 = arith.constant 0 : i32
    return %arg0, %c0_i32 : i32, i32
  }
}

</mosaic_0001>

<llo_original>
// kernel: a_call__.4
$region0: #{a_call__.4}
  #allocation0 [shape = 'u32[]', space=smem, size = 0x4, offset = 0x4, fixed_abs, tag = 'smem constant byte address 0x4 - core index']
  #allocation1 [shape = 'u32[144,128]{1,0:T(1,128)}', space=vmem, size = 0x12000, scoped, tag = 'internal scratch']
  %s0 = inlined_call_operand.vmem [shape: f32[48,19], index: 0, kind: input, shape index: {}]
  %s1 = inlined_call_operand.vmem [shape: f32[19,32], index: 1, kind: input, shape index: {}]
  %s2 = inlined_call_operand.vmem [shape: f32[1,32], index: 2, kind: input, shape index: {}]
  %s3 = inlined_call_operand.vmem [shape: f32[32,8], index: 3, kind: input, shape index: {}]
  %s4 = inlined_call_operand.vmem [shape: f32[1,8], index: 4, kind: input, shape index: {}]
  %s5 = inlined_call_operand.vmem [shape: f32[48,8], index: 5, kind: output, shape index: {}]
  %s6 = sld [smem:[#allocation0]]
  $region30: #{a_call__.4} parent=0
    _
  %s8 = ssub.s32 1, %s6
  %s9 = scalar_select 0, %s8, %s6
  // Predicated region
  $region2: #{a_call__.4} parent=0 // pred_check
    _
  $region3: #{a_call__.4} parent=0 // pred_check_branch
    %11 = sbr.rel (0) target = $region5
  $region4: #{a_call__.4} parent=0 // pred_region
    _
  $region5: #{a_call__.4} parent=0 // pred_fallthru
    _
  // Predicated region
  $region6: #{a_call__.4} parent=0 // pred_check
    _
  $region7: #{a_call__.4} parent=0 // pred_check_branch
    %13 = sbr.rel (0) target = $region9
  $region8: #{a_call__.4} parent=0 // pred_region
    _
  $region9: #{a_call__.4} parent=0 // pred_fallthru
    _
  // Predicated region
  $region10: #{a_call__.4} parent=0 // pred_check
    _
  $region11: #{a_call__.4} parent=0 // pred_check_branch
    %15 = sbr.rel (0) target = $region13
  $region12: #{a_call__.4} parent=0 // pred_region
    _
  $region13: #{a_call__.4} parent=0 // pred_fallthru
    _
  // Predicated region
  $region14: #{a_call__.4} parent=0 // pred_check
    _
  $region15: #{a_call__.4} parent=0 // pred_check_branch
    %17 = sbr.rel (0) target = $region17
  $region16: #{a_call__.4} parent=0 // pred_region
    _
  $region17: #{a_call__.4} parent=0 // pred_fallthru
    _
  // Predicated region
  $region18: #{a_call__.4} parent=0 // pred_check
    _
  $region19: #{a_call__.4} parent=0 // pred_check_branch
    %19 = sbr.rel (0) target = $region21
  $region20: #{a_call__.4} parent=0 // pred_region
    _
  $region21: #{a_call__.4} parent=0 // pred_fallthru
    _
  %v20 = vld [vmem:[%s0] sm:$0xff]
  %v21 = vld [vmem:[%s0 + $0x8] sm:$0xff]
  %v22 = vld [vmem:[%s0 + $0x10] sm:$0xff]
  %v23 = vld [vmem:[%s0 + $0x18] sm:$0xff]
  %v24 = vld [vmem:[%s0 + $0x20] sm:$0xff]
  %v25 = vld [vmem:[%s0 + $0x28] sm:$0xff]
  %v26 = vld [vmem:[%s1] sm:$0xff]
  %v27 = vld [vmem:[%s1 + $0x8] sm:$0xff]
  %v28 = vld [vmem:[%s1 + $0x10] sm:$0x7]
  %v29 = vld [vmem:[%s2] sm:$0x1]
  %v31 = vlaneseq
  %v32 = vshrl.u32 %v31, 7
  %v33 = vsub.s32 0, %v32
  %v34 = vrot.slane %v29, %v33
  %vm36 = vcmask 154624
  %v38 = vsel %vm36, %v20, 0
  %v41 = vsel %vm36, %v21, 0
  %v44 = vsel %vm36, %v22, 0
  %v47 = vsel %vm36, %v23, 0
  %v50 = vsel %vm36, %v24, 0
  %v53 = vsel %vm36, %v25, 0
  %vm55 = vcmask 1042432
  %v57 = vsel %vm55, %v28, 0
  %59 = vmatprep.subr.mxu0 0.0
  %60 = vmatpush1.msra.mxu0 0.0
  %61 = vmatprep.subr.mxu0 0.0
  %62 = vmatpush1.msra.mxu0 0.0
  %63 = vmatprep.subr.mxu0 0.0
  %64 = vmatpush1.msra.mxu0 0.0
  %65 = vmatprep.subr.mxu0 0.0
  %66 = vmatpush1.msra.mxu0 0.0
  %67 = vmatprep.subr.mxu0 0.0
  %68 = vmatpush1.msra.mxu0 0.0
  %69 = vmatprep.subr.mxu0 0.0
  %70 = vmatpush1.msra.mxu0 0.0
  %71 = vmatprep.subr.mxu0 0.0
  %72 = vmatpush1.msra.mxu0 0.0
  %73 = vmatprep.subr.mxu0 0.0
  %74 = vmatpush1.msra.mxu0 0.0
  %75 = vmatprep.subr.mxu0 0.0
  %76 = vmatpush1.msra.mxu0 0.0
  %77 = vmatprep.subr.mxu0 0.0
  %78 = vmatpush1.msra.mxu0 0.0
  %79 = vmatprep.subr.mxu0 0.0
  %80 = vmatpush1.msra.mxu0 0.0
  %81 = vmatprep.subr.mxu0 0.0
  %82 = vmatpush1.msra.mxu0 0.0
  %83 = vmatprep.subr.mxu0 0.0
  %84 = vmatpush1.msra.mxu0 0.0
  %85 = vmatprep.subr.mxu0 0.0
  %86 = vmatpush1.msra.mxu0 %v57
  %87 = vmatprep.subr.mxu0 0.0
  %88 = vmatpush1.msra.mxu0 %v27
  %89 = vmatprep.subr.mxu0 0.0
  %90 = vmatpush1.msra.mxu0 %v26
  %91 = vmatprep.subr.mxu0 0.0
  %92 = vmatpush2.msra.mxu0 0.0
  %93 = vmatprep.subr.mxu0 0.0
  %94 = vmatpush2.msra.mxu0 0.0
  %95 = vmatprep.subr.mxu0 0.0
  %96 = vmatpush2.msra.mxu0 0.0
  %97 = vmatprep.subr.mxu0 0.0
  %98 = vmatpush2.msra.mxu0 0.0
  %99 = vmatprep.subr.mxu0 0.0
  %100 = vmatpush2.msra.mxu0 0.0
  %101 = vmatprep.subr.mxu0 0.0
  %102 = vmatpush2.msra.mxu0 0.0
  %103 = vmatprep.subr.mxu0 0.0
  %104 = vmatpush2.msra.mxu0 0.0
  %105 = vmatprep.subr.mxu0 0.0
  %106 = vmatpush2.msra.mxu0 0.0
  %107 = vmatprep.subr.mxu0 0.0
  %108 = vmatpush2.msra.mxu0 0.0
  %109 = vmatprep.subr.mxu0 0.0
  %110 = vmatpush2.msra.mxu0 0.0
  %111 = vmatprep.subr.mxu0 0.0
  %112 = vmatpush2.msra.mxu0 0.0
  %113 = vmatprep.subr.mxu0 0.0
  %114 = vmatpush2.msra.mxu0 0.0
  %115 = vmatprep.subr.mxu0 0.0
  %116 = vmatpush2.msra.mxu0 0.0
  %117 = vmatprep.subr.mxu0 0.0
  %118 = vmatpush2.msra.mxu0 0.0
  %119 = vmatprep.subr.mxu0 0.0
  %120 = vmatpush2.msra.mxu0 0.0
  %121 = vmatprep.subr.mxu0 0.0
  %122 = vmatpush2.msra.mxu0 0.0
  %123 = vmatprep.mubr.f32.mxu0 0.0
  %124 = vmatmul.mubr.f32.gmra.mxu0 %v38
  %v125 = vpop.f32.mrf.mxu0
  %v126 = vadd.f32 %v34, %v125
  %v127 = vpop.f32.mrf.mxu0
  %128 = vmatprep.mubr.f32.mxu0 0.0
  %129 = vmatmul.mubr.f32.gmra.mxu0 %v41
  %v130 = vpop.f32.mrf.mxu0
  %v131 = vadd.f32 %v34, %v130
  %v132 = vpop.f32.mrf.mxu0
  %133 = vmatprep.mubr.f32.mxu0 0.0
  %134 = vmatmul.mubr.f32.gmra.mxu0 %v44
  %v135 = vpop.f32.mrf.mxu0
  %v136 = vadd.f32 %v34, %v135
  %v137 = vpop.f32.mrf.mxu0
  %138 = vmatprep.mubr.f32.mxu0 0.0
  %139 = vmatmul.mubr.f32.gmra.mxu0 %v47
  %v140 = vpop.f32.mrf.mxu0
  %v141 = vadd.f32 %v34, %v140
  %v142 = vpop.f32.mrf.mxu0
  %143 = vmatprep.mubr.f32.mxu0 0.0
  %144 = vmatmul.mubr.f32.gmra.mxu0 %v50
  %v145 = vpop.f32.mrf.mxu0
  %v146 = vadd.f32 %v34, %v145
  %v147 = vpop.f32.mrf.mxu0
  %148 = vmatprep.mubr.f32.mxu0 0.0
  %149 = vmatmul.mubr.f32.gmra.mxu0 %v53
  %v150 = vpop.f32.mrf.mxu0
  %v151 = vadd.f32 %v34, %v150
  %v152 = vpop.f32.mrf.mxu0
  %153 = vdwg.mxu0
  %v154 = vmax.f32 %v126, 0.0
  %v155 = vmax.f32 %v131, 0.0
  %v156 = vmax.f32 %v136, 0.0
  %v157 = vmax.f32 %v141, 0.0
  %v158 = vmax.f32 %v146, 0.0
  %v159 = vmax.f32 %v151, 0.0
  %v160 = vld [vmem:[%s3] sm:$0xff]
  %v161 = vld [vmem:[%s3 + $0x8] sm:$0xff]
  %v162 = vld [vmem:[%s3 + $0x10] sm:$0xff]
  %v163 = vld [vmem:[%s3 + $0x18] sm:$0xff]
  %v164 = vld [vmem:[%s4] sm:$0x1]
  %v166 = vlaneseq
  %v167 = vshrl.u32 %v166, 7
  %v168 = vsub.s32 0, %v167
  %v169 = vrot.slane %v164, %v168
  %vm171 = vcmask 261120
  %v173 = vsel %vm171, %v154, 0
  %v176 = vsel %vm171, %v155, 0
  %v179 = vsel %vm171, %v156, 0
  %v182 = vsel %vm171, %v157, 0
  %v185 = vsel %vm171, %v158, 0
  %v188 = vsel %vm171, %v159, 0
  %190 = vmatprep.subr.mxu0 0.0
  %191 = vmatpush1.msra.mxu0 0.0
  %192 = vmatprep.subr.mxu0 0.0
  %193 = vmatpush1.msra.mxu0 0.0
  %194 = vmatprep.subr.mxu0 0.0
  %195 = vmatpush1.msra.mxu0 0.0
  %196 = vmatprep.subr.mxu0 0.0
  %197 = vmatpush1.msra.mxu0 0.0
  %198 = vmatprep.subr.mxu0 0.0
  %199 = vmatpush1.msra.mxu0 0.0
  %200 = vmatprep.subr.mxu0 0.0
  %201 = vmatpush1.msra.mxu0 0.0
  %202 = vmatprep.subr.mxu0 0.0
  %203 = vmatpush1.msra.mxu0 0.0
  %204 = vmatprep.subr.mxu0 0.0
  %205 = vmatpush1.msra.mxu0 0.0
  %206 = vmatprep.subr.mxu0 0.0
  %207 = vmatpush1.msra.mxu0 0.0
  %208 = vmatprep.subr.mxu0 0.0
  %209 = vmatpush1.msra.mxu0 0.0
  %210 = vmatprep.subr.mxu0 0.0
  %211 = vmatpush1.msra.mxu0 0.0
  %212 = vmatprep.subr.mxu0 0.0
  %213 = vmatpush1.msra.mxu0 0.0
  %214 = vmatprep.subr.mxu0 0.0
  %215 = vmatpush1.msra.mxu0 %v163
  %216 = vmatprep.subr.mxu0 0.0
  %217 = vmatpush1.msra.mxu0 %v162
  %218 = vmatprep.subr.mxu0 0.0
  %219 = vmatpush1.msra.mxu0 %v161
  %220 = vmatprep.subr.mxu0 0.0
  %221 = vmatpush1.msra.mxu0 %v160
  %222 = vmatprep.subr.mxu0 0.0
  %223 = vmatpush2.msra.mxu0 0.0
  %224 = vmatprep.subr.mxu0 0.0
  %225 = vmatpush2.msra.mxu0 0.0
  %226 = vmatprep.subr.mxu0 0.0
  %227 = vmatpush2.msra.mxu0 0.0
  %228 = vmatprep.subr.mxu0 0.0
  %229 = vmatpush2.msra.mxu0 0.0
  %230 = vmatprep.subr.mxu0 0.0
  %231 = vmatpush2.msra.mxu0 0.0
  %232 = vmatprep.subr.mxu0 0.0
  %233 = vmatpush2.msra.mxu0 0.0
  %234 = vmatprep.subr.mxu0 0.0
  %235 = vmatpush2.msra.mxu0 0.0
  %236 = vmatprep.subr.mxu0 0.0
  %237 = vmatpush2.msra.mxu0 0.0
  %238 = vmatprep.subr.mxu0 0.0
  %239 = vmatpush2.msra.mxu0 0.0
  %240 = vmatprep.subr.mxu0 0.0
  %241 = vmatpush2.msra.mxu0 0.0
  %242 = vmatprep.subr.mxu0 0.0
  %243 = vmatpush2.msra.mxu0 0.0
  %244 = vmatprep.subr.mxu0 0.0
  %245 = vmatpush2.msra.mxu0 0.0
  %246 = vmatprep.subr.mxu0 0.0
  %247 = vmatpush2.msra.mxu0 0.0
  %248 = vmatprep.subr.mxu0 0.0
  %249 = vmatpush2.msra.mxu0 0.0
  %250 = vmatprep.subr.mxu0 0.0
  %251 = vmatpush2.msra.mxu0 0.0
  %252 = vmatprep.subr.mxu0 0.0
  %253 = vmatpush2.msra.mxu0 0.0
  %254 = vmatprep.mubr.f32.mxu0 0.0
  %255 = vmatmul.mubr.f32.gmra.mxu0 %v173
  %v256 = vpop.f32.mrf.mxu0
  %v257 = vadd.f32 %v169, %v256
  %v258 = vpop.f32.mrf.mxu0
  %259 = vmatprep.mubr.f32.mxu0 0.0
  %260 = vmatmul.mubr.f32.gmra.mxu0 %v176
  %v261 = vpop.f32.mrf.mxu0
  %v262 = vadd.f32 %v169, %v261
  %v263 = vpop.f32.mrf.mxu0
  %264 = vmatprep.mubr.f32.mxu0 0.0
  %265 = vmatmul.mubr.f32.gmra.mxu0 %v179
  %v266 = vpop.f32.mrf.mxu0
  %v267 = vadd.f32 %v169, %v266
  %v268 = vpop.f32.mrf.mxu0
  %269 = vmatprep.mubr.f32.mxu0 0.0
  %270 = vmatmul.mubr.f32.gmra.mxu0 %v182
  %v271 = vpop.f32.mrf.mxu0
  %v272 = vadd.f32 %v169, %v271
  %v273 = vpop.f32.mrf.mxu0
  %274 = vmatprep.mubr.f32.mxu0 0.0
  %275 = vmatmul.mubr.f32.gmra.mxu0 %v185
  %v276 = vpop.f32.mrf.mxu0
  %v277 = vadd.f32 %v169, %v276
  %v278 = vpop.f32.mrf.mxu0
  %279 = vmatprep.mubr.f32.mxu0 0.0
  %280 = vmatmul.mubr.f32.gmra.mxu0 %v188
  %v281 = vpop.f32.mrf.mxu0
  %v282 = vadd.f32 %v169, %v281
  %v283 = vpop.f32.mrf.mxu0
  %284 = vdwg.mxu0
  %vm285 = vcmask 64512
  %286 = vst.msk [vmem:[%s5] sm:$0xff] %vm285, %v257
  %287 = vst.msk [vmem:[%s5 + $0x8] sm:$0xff] %vm285, %v262
  %288 = vst.msk [vmem:[%s5 + $0x10] sm:$0xff] %vm285, %v267
  %289 = vst.msk [vmem:[%s5 + $0x18] sm:$0xff] %vm285, %v272
  %290 = vst.msk [vmem:[%s5 + $0x20] sm:$0xff] %vm285, %v277
  %291 = vst.msk [vmem:[%s5 + $0x28] sm:$0xff] %vm285, %v282
  // Predicated region
  $region22: #{a_call__.4} parent=0 // pred_check
    _
  $region23: #{a_call__.4} parent=0 // pred_check_branch
    %293 = sbr.rel (0) target = $region25
  $region24: #{a_call__.4} parent=0 // pred_region
    _
  $region25: #{a_call__.4} parent=0 // pred_fallthru
    _
  // Predicated region
  $region26: #{a_call__.4} parent=0 // pred_check
    _
  $region27: #{a_call__.4} parent=0 // pred_check_branch
    %295 = sbr.rel (0) target = $region29
  $region28: #{a_call__.4} parent=0 // pred_region
    _
  $region29: #{a_call__.4} parent=0 // pred_fallthru
    _

// kernel: a_call__.5
$region0: #{a_call__.5}
  #allocation0 [shape = 'u32[]', space=smem, size = 0x4, offset = 0x4, fixed_abs, tag = 'smem constant byte address 0x4 - core index']
  #allocation1 [shape = 'u32[144,128]{1,0:T(1,128)}', space=vmem, size = 0x12000, scoped, tag = 'internal scratch']
  %s0 = inlined_call_operand.vmem [shape: f32[16,18], index: 0, kind: input, shape index: {}]
  %s1 = inlined_call_operand.vmem [shape: f32[18,32], index: 1, kind: input, shape index: {}]
  %s2 = inlined_call_operand.vmem [shape: f32[1,32], index: 2, kind: input, shape index: {}]
  %s3 = inlined_call_operand.vmem [shape: f32[32,8], index: 3, kind: input, shape index: {}]
  %s4 = inlined_call_operand.vmem [shape: f32[1,8], index: 4, kind: input, shape index: {}]
  %s5 = inlined_call_operand.vmem [shape: f32[16,8], index: 5, kind: output, shape index: {}]
  %s6 = sld [smem:[#allocation0]]
  $region30: #{a_call__.5} parent=0
    _
  %s8 = ssub.s32 1, %s6
  %s9 = scalar_select 0, %s8, %s6
  // Predicated region
  $region2: #{a_call__.5} parent=0 // pred_check
    _
  $region3: #{a_call__.5} parent=0 // pred_check_branch
    %11 = sbr.rel (0) target = $region5
  $region4: #{a_call__.5} parent=0 // pred_region
    _
  $region5: #{a_call__.5} parent=0 // pred_fallthru
    _
  // Predicated region
  $region6: #{a_call__.5} parent=0 // pred_check
    _
  $region7: #{a_call__.5} parent=0 // pred_check_branch
    %13 = sbr.rel (0) target = $region9
  $region8: #{a_call__.5} parent=0 // pred_region
    _
  $region9: #{a_call__.5} parent=0 // pred_fallthru
    _
  // Predicated region
  $region10: #{a_call__.5} parent=0 // pred_check
    _
  $region11: #{a_call__.5} parent=0 // pred_check_branch
    %15 = sbr.rel (0) target = $region13
  $region12: #{a_call__.5} parent=0 // pred_region
    _
  $region13: #{a_call__.5} parent=0 // pred_fallthru
    _
  // Predicated region
  $region14: #{a_call__.5} parent=0 // pred_check
    _
  $region15: #{a_call__.5} parent=0 // pred_check_branch
    %17 = sbr.rel (0) target = $region17
  $region16: #{a_call__.5} parent=0 // pred_region
    _
  $region17: #{a_call__.5} parent=0 // pred_fallthru
    _
  // Predicated region
  $region18: #{a_call__.5} parent=0 // pred_check
    _
  $region19: #{a_call__.5} parent=0 // pred_check_branch
    %19 = sbr.rel (0) target = $region21
  $region20: #{a_call__.5} parent=0 // pred_region
    _
  $region21: #{a_call__.5} parent=0 // pred_fallthru
    _
  %v20 = vld [vmem:[%s0] sm:$0xff]
  %v21 = vld [vmem:[%s0 + $0x8] sm:$0xff]
  %v22 = vld [vmem:[%s1] sm:$0xff]
  %v23 = vld [vmem:[%s1 + $0x8] sm:$0xff]
  %v24 = vld [vmem:[%s1 + $0x10] sm:$0x3]
  %v25 = vld [vmem:[%s2] sm:$0x1]
  %v27 = vlaneseq
  %v28 = vshrl.u32 %v27, 7
  %v29 = vsub.s32 0, %v28
  %v30 = vrot.slane %v25, %v29
  %vm32 = vcmask 146432
  %v34 = vsel %vm32, %v20, 0
  %v37 = vsel %vm32, %v21, 0
  %vm39 = vcmask 1041408
  %v41 = vsel %vm39, %v24, 0
  %43 = vmatprep.subr.mxu0 0.0
  %44 = vmatpush1.msra.mxu0 0.0
  %45 = vmatprep.subr.mxu0 0.0
  %46 = vmatpush1.msra.mxu0 0.0
  %47 = vmatprep.subr.mxu0 0.0
  %48 = vmatpush1.msra.mxu0 0.0
  %49 = vmatprep.subr.mxu0 0.0
  %50 = vmatpush1.msra.mxu0 0.0
  %51 = vmatprep.subr.mxu0 0.0
  %52 = vmatpush1.msra.mxu0 0.0
  %53 = vmatprep.subr.mxu0 0.0
  %54 = vmatpush1.msra.mxu0 0.0
  %55 = vmatprep.subr.mxu0 0.0
  %56 = vmatpush1.msra.mxu0 0.0
  %57 = vmatprep.subr.mxu0 0.0
  %58 = vmatpush1.msra.mxu0 0.0
  %59 = vmatprep.subr.mxu0 0.0
  %60 = vmatpush1.msra.mxu0 0.0
  %61 = vmatprep.subr.mxu0 0.0
  %62 = vmatpush1.msra.mxu0 0.0
  %63 = vmatprep.subr.mxu0 0.0
  %64 = vmatpush1.msra.mxu0 0.0
  %65 = vmatprep.subr.mxu0 0.0
  %66 = vmatpush1.msra.mxu0 0.0
  %67 = vmatprep.subr.mxu0 0.0
  %68 = vmatpush1.msra.mxu0 0.0
  %69 = vmatprep.subr.mxu0 0.0
  %70 = vmatpush1.msra.mxu0 %v41
  %71 = vmatprep.subr.mxu0 0.0
  %72 = vmatpush1.msra.mxu0 %v23
  %73 = vmatprep.subr.mxu0 0.0
  %74 = vmatpush1.msra.mxu0 %v22
  %75 = vmatprep.subr.mxu0 0.0
  %76 = vmatpush2.msra.mxu0 0.0
  %77 = vmatprep.subr.mxu0 0.0
  %78 = vmatpush2.msra.mxu0 0.0
  %79 = vmatprep.subr.mxu0 0.0
  %80 = vmatpush2.msra.mxu0 0.0
  %81 = vmatprep.subr.mxu0 0.0
  %82 = vmatpush2.msra.mxu0 0.0
  %83 = vmatprep.subr.mxu0 0.0
  %84 = vmatpush2.msra.mxu0 0.0
  %85 = vmatprep.subr.mxu0 0.0
  %86 = vmatpush2.msra.mxu0 0.0
  %87 = vmatprep.subr.mxu0 0.0
  %88 = vmatpush2.msra.mxu0 0.0
  %89 = vmatprep.subr.mxu0 0.0
  %90 = vmatpush2.msra.mxu0 0.0
  %91 = vmatprep.subr.mxu0 0.0
  %92 = vmatpush2.msra.mxu0 0.0
  %93 = vmatprep.subr.mxu0 0.0
  %94 = vmatpush2.msra.mxu0 0.0
  %95 = vmatprep.subr.mxu0 0.0
  %96 = vmatpush2.msra.mxu0 0.0
  %97 = vmatprep.subr.mxu0 0.0
  %98 = vmatpush2.msra.mxu0 0.0
  %99 = vmatprep.subr.mxu0 0.0
  %100 = vmatpush2.msra.mxu0 0.0
  %101 = vmatprep.subr.mxu0 0.0
  %102 = vmatpush2.msra.mxu0 0.0
  %103 = vmatprep.subr.mxu0 0.0
  %104 = vmatpush2.msra.mxu0 0.0
  %105 = vmatprep.subr.mxu0 0.0
  %106 = vmatpush2.msra.mxu0 0.0
  %107 = vmatprep.mubr.f32.mxu0 0.0
  %108 = vmatmul.mubr.f32.gmra.mxu0 %v34
  %v109 = vpop.f32.mrf.mxu0
  %v110 = vadd.f32 %v30, %v109
  %v111 = vpop.f32.mrf.mxu0
  %112 = vmatprep.mubr.f32.mxu0 0.0
  %113 = vmatmul.mubr.f32.gmra.mxu0 %v37
  %v114 = vpop.f32.mrf.mxu0
  %v115 = vadd.f32 %v30, %v114
  %v116 = vpop.f32.mrf.mxu0
  %117 = vdwg.mxu0
  %v118 = vmax.f32 %v110, 0.0
  %v119 = vmax.f32 %v115, 0.0
  %v120 = vld [vmem:[%s3] sm:$0xff]
  %v121 = vld [vmem:[%s3 + $0x8] sm:$0xff]
  %v122 = vld [vmem:[%s3 + $0x10] sm:$0xff]
  %v123 = vld [vmem:[%s3 + $0x18] sm:$0xff]
  %v124 = vld [vmem:[%s4] sm:$0x1]
  %v126 = vlaneseq
  %v127 = vshrl.u32 %v126, 7
  %v128 = vsub.s32 0, %v127
  %v129 = vrot.slane %v124, %v128
  %vm131 = vcmask 261120
  %v133 = vsel %vm131, %v118, 0
  %v136 = vsel %vm131, %v119, 0
  %138 = vmatprep.subr.mxu0 0.0
  %139 = vmatpush1.msra.mxu0 0.0
  %140 = vmatprep.subr.mxu0 0.0
  %141 = vmatpush1.msra.mxu0 0.0
  %142 = vmatprep.subr.mxu0 0.0
  %143 = vmatpush1.msra.mxu0 0.0
  %144 = vmatprep.subr.mxu0 0.0
  %145 = vmatpush1.msra.mxu0 0.0
  %146 = vmatprep.subr.mxu0 0.0
  %147 = vmatpush1.msra.mxu0 0.0
  %148 = vmatprep.subr.mxu0 0.0
  %149 = vmatpush1.msra.mxu0 0.0
  %150 = vmatprep.subr.mxu0 0.0
  %151 = vmatpush1.msra.mxu0 0.0
  %152 = vmatprep.subr.mxu0 0.0
  %153 = vmatpush1.msra.mxu0 0.0
  %154 = vmatprep.subr.mxu0 0.0
  %155 = vmatpush1.msra.mxu0 0.0
  %156 = vmatprep.subr.mxu0 0.0
  %157 = vmatpush1.msra.mxu0 0.0
  %158 = vmatprep.subr.mxu0 0.0
  %159 = vmatpush1.msra.mxu0 0.0
  %160 = vmatprep.subr.mxu0 0.0
  %161 = vmatpush1.msra.mxu0 0.0
  %162 = vmatprep.subr.mxu0 0.0
  %163 = vmatpush1.msra.mxu0 %v123
  %164 = vmatprep.subr.mxu0 0.0
  %165 = vmatpush1.msra.mxu0 %v122
  %166 = vmatprep.subr.mxu0 0.0
  %167 = vmatpush1.msra.mxu0 %v121
  %168 = vmatprep.subr.mxu0 0.0
  %169 = vmatpush1.msra.mxu0 %v120
  %170 = vmatprep.subr.mxu0 0.0
  %171 = vmatpush2.msra.mxu0 0.0
  %172 = vmatprep.subr.mxu0 0.0
  %173 = vmatpush2.msra.mxu0 0.0
  %174 = vmatprep.subr.mxu0 0.0
  %175 = vmatpush2.msra.mxu0 0.0
  %176 = vmatprep.subr.mxu0 0.0
  %177 = vmatpush2.msra.mxu0 0.0
  %178 = vmatprep.subr.mxu0 0.0
  %179 = vmatpush2.msra.mxu0 0.0
  %180 = vmatprep.subr.mxu0 0.0
  %181 = vmatpush2.msra.mxu0 0.0
  %182 = vmatprep.subr.mxu0 0.0
  %183 = vmatpush2.msra.mxu0 0.0
  %184 = vmatprep.subr.mxu0 0.0
  %185 = vmatpush2.msra.mxu0 0.0
  %186 = vmatprep.subr.mxu0 0.0
  %187 = vmatpush2.msra.mxu0 0.0
  %188 = vmatprep.subr.mxu0 0.0
  %189 = vmatpush2.msra.mxu0 0.0
  %190 = vmatprep.subr.mxu0 0.0
  %191 = vmatpush2.msra.mxu0 0.0
  %192 = vmatprep.subr.mxu0 0.0
  %193 = vmatpush2.msra.mxu0 0.0
  %194 = vmatprep.subr.mxu0 0.0
  %195 = vmatpush2.msra.mxu0 0.0
  %196 = vmatprep.subr.mxu0 0.0
  %197 = vmatpush2.msra.mxu0 0.0
  %198 = vmatprep.subr.mxu0 0.0
  %199 = vmatpush2.msra.mxu0 0.0
  %200 = vmatprep.subr.mxu0 0.0
  %201 = vmatpush2.msra.mxu0 0.0
  %202 = vmatprep.mubr.f32.mxu0 0.0
  %203 = vmatmul.mubr.f32.gmra.mxu0 %v133
  %v204 = vpop.f32.mrf.mxu0
  %v205 = vadd.f32 %v129, %v204
  %v206 = vpop.f32.mrf.mxu0
  %207 = vmatprep.mubr.f32.mxu0 0.0
  %208 = vmatmul.mubr.f32.gmra.mxu0 %v136
  %v209 = vpop.f32.mrf.mxu0
  %v210 = vadd.f32 %v129, %v209
  %v211 = vpop.f32.mrf.mxu0
  %212 = vdwg.mxu0
  %vm213 = vcmask 64512
  %214 = vst.msk [vmem:[%s5] sm:$0xff] %vm213, %v205
  %215 = vst.msk [vmem:[%s5 + $0x8] sm:$0xff] %vm213, %v210
  // Predicated region
  $region22: #{a_call__.5} parent=0 // pred_check
    _
  $region23: #{a_call__.5} parent=0 // pred_check_branch
    %217 = sbr.rel (0) target = $region25
  $region24: #{a_call__.5} parent=0 // pred_region
    _
  $region25: #{a_call__.5} parent=0 // pred_fallthru
    _
  // Predicated region
  $region26: #{a_call__.5} parent=0 // pred_check
    _
  $region27: #{a_call__.5} parent=0 // pred_check_branch
    %219 = sbr.rel (0) target = $region29
  $region28: #{a_call__.5} parent=0 // pred_region
    _
  $region29: #{a_call__.5} parent=0 // pred_fallthru
    _

// kernel: a_call__.6
$region0: #{a_call__.6}
  #allocation0 [shape = 'u32[]', space=smem, size = 0x4, offset = 0x4, fixed_abs, tag = 'smem constant byte address 0x4 - core index']
  #allocation1 [shape = 'u32[144,128]{1,0:T(1,128)}', space=vmem, size = 0x12000, scoped, tag = 'internal scratch']
  #allocation2 [shape = 'f32[1,1]{1,0:T(1,128)S(1)}', space=vmem, size = 0x200, scoped, tag = 'scoped memory for a_call__.6']
  %s0 = inlined_call_operand.vmem [shape: f32[48,26], index: 0, kind: input, shape index: {}]
  %s1 = inlined_call_operand.vmem [shape: f32[26,32], index: 1, kind: input, shape index: {}]
  %s2 = inlined_call_operand.vmem [shape: f32[1,32], index: 2, kind: input, shape index: {}]
  %s3 = inlined_call_operand.vmem [shape: f32[32,1], index: 3, kind: input, shape index: {}]
  %s4 = inlined_call_operand.<no memory space> [shape: f32[1,1], index: 4, kind: input, shape index: {}]
  %s5 = inlined_call_operand.vmem [shape: f32[48,1], index: 5, kind: output, shape index: {}]
  %s6 = sld [smem:[#allocation0]]
  $region30: #{a_call__.6} parent=0
    _
  %s8 = ssub.s32 1, %s6
  %s9 = scalar_select 0, %s8, %s6
  %v10 = vstv %s4
  %11 = vst [vmem:[#allocation2] sm:$0x1] %v10
  // Predicated region
  $region2: #{a_call__.6} parent=0 // pred_check
    _
  $region3: #{a_call__.6} parent=0 // pred_check_branch
    %13 = sbr.rel (0) target = $region5
  $region4: #{a_call__.6} parent=0 // pred_region
    _
  $region5: #{a_call__.6} parent=0 // pred_fallthru
    _
  // Predicated region
  $region6: #{a_call__.6} parent=0 // pred_check
    _
  $region7: #{a_call__.6} parent=0 // pred_check_branch
    %15 = sbr.rel (0) target = $region9
  $region8: #{a_call__.6} parent=0 // pred_region
    _
  $region9: #{a_call__.6} parent=0 // pred_fallthru
    _
  // Predicated region
  $region10: #{a_call__.6} parent=0 // pred_check
    _
  $region11: #{a_call__.6} parent=0 // pred_check_branch
    %17 = sbr.rel (0) target = $region13
  $region12: #{a_call__.6} parent=0 // pred_region
    _
  $region13: #{a_call__.6} parent=0 // pred_fallthru
    _
  // Predicated region
  $region14: #{a_call__.6} parent=0 // pred_check
    _
  $region15: #{a_call__.6} parent=0 // pred_check_branch
    %19 = sbr.rel (0) target = $region17
  $region16: #{a_call__.6} parent=0 // pred_region
    _
  $region17: #{a_call__.6} parent=0 // pred_fallthru
    _
  // Predicated region
  $region18: #{a_call__.6} parent=0 // pred_check
    _
  $region19: #{a_call__.6} parent=0 // pred_check_branch
    %21 = sbr.rel (0) target = $region21
  $region20: #{a_call__.6} parent=0 // pred_region
    _
  $region21: #{a_call__.6} parent=0 // pred_fallthru
    _
  %v22 = vld [vmem:[%s0] sm:$0xff]
  %v23 = vld [vmem:[%s0 + $0x8] sm:$0xff]
  %v24 = vld [vmem:[%s0 + $0x10] sm:$0xff]
  %v25 = vld [vmem:[%s0 + $0x18] sm:$0xff]
  %v26 = vld [vmem:[%s0 + $0x20] sm:$0xff]
  %v27 = vld [vmem:[%s0 + $0x28] sm:$0xff]
  %v28 = vld [vmem:[%s1] sm:$0xff]
  %v29 = vld [vmem:[%s1 + $0x8] sm:$0xff]
  %v30 = vld [vmem:[%s1 + $0x10] sm:$0xff]
  %v31 = vld [vmem:[%s1 + $0x18] sm:$0x3]
  %v32 = vld [vmem:[%s2] sm:$0x1]
  %v34 = vlaneseq
  %v35 = vshrl.u32 %v34, 7
  %v36 = vsub.s32 0, %v35
  %v37 = vrot.slane %v32, %v36
  %vm39 = vcmask 211968
  %v41 = vsel %vm39, %v22, 0
  %v44 = vsel %vm39, %v23, 0
  %v47 = vsel %vm39, %v24, 0
  %v50 = vsel %vm39, %v25, 0
  %v53 = vsel %vm39, %v26, 0
  %v56 = vsel %vm39, %v27, 0
  %vm58 = vcmask 1041408
  %v60 = vsel %vm58, %v31, 0
  %62 = vmatprep.subr.mxu0 0.0
  %63 = vmatpush1.msra.mxu0 0.0
  %64 = vmatprep.subr.mxu0 0.0
  %65 = vmatpush1.msra.mxu0 0.0
  %66 = vmatprep.subr.mxu0 0.0
  %67 = vmatpush1.msra.mxu0 0.0
  %68 = vmatprep.subr.mxu0 0.0
  %69 = vmatpush1.msra.mxu0 0.0
  %70 = vmatprep.subr.mxu0 0.0
  %71 = vmatpush1.msra.mxu0 0.0
  %72 = vmatprep.subr.mxu0 0.0
  %73 = vmatpush1.msra.mxu0 0.0
  %74 = vmatprep.subr.mxu0 0.0
  %75 = vmatpush1.msra.mxu0 0.0
  %76 = vmatprep.subr.mxu0 0.0
  %77 = vmatpush1.msra.mxu0 0.0
  %78 = vmatprep.subr.mxu0 0.0
  %79 = vmatpush1.msra.mxu0 0.0
  %80 = vmatprep.subr.mxu0 0.0
  %81 = vmatpush1.msra.mxu0 0.0
  %82 = vmatprep.subr.mxu0 0.0
  %83 = vmatpush1.msra.mxu0 0.0
  %84 = vmatprep.subr.mxu0 0.0
  %85 = vmatpush1.msra.mxu0 0.0
  %86 = vmatprep.subr.mxu0 0.0
  %87 = vmatpush1.msra.mxu0 %v60
  %88 = vmatprep.subr.mxu0 0.0
  %89 = vmatpush1.msra.mxu0 %v30
  %90 = vmatprep.subr.mxu0 0.0
  %91 = vmatpush1.msra.mxu0 %v29
  %92 = vmatprep.subr.mxu0 0.0
  %93 = vmatpush1.msra.mxu0 %v28
  %94 = vmatprep.subr.mxu0 0.0
  %95 = vmatpush2.msra.mxu0 0.0
  %96 = vmatprep.subr.mxu0 0.0
  %97 = vmatpush2.msra.mxu0 0.0
  %98 = vmatprep.subr.mxu0 0.0
  %99 = vmatpush2.msra.mxu0 0.0
  %100 = vmatprep.subr.mxu0 0.0
  %101 = vmatpush2.msra.mxu0 0.0
  %102 = vmatprep.subr.mxu0 0.0
  %103 = vmatpush2.msra.mxu0 0.0
  %104 = vmatprep.subr.mxu0 0.0
  %105 = vmatpush2.msra.mxu0 0.0
  %106 = vmatprep.subr.mxu0 0.0
  %107 = vmatpush2.msra.mxu0 0.0
  %108 = vmatprep.subr.mxu0 0.0
  %109 = vmatpush2.msra.mxu0 0.0
  %110 = vmatprep.subr.mxu0 0.0
  %111 = vmatpush2.msra.mxu0 0.0
  %112 = vmatprep.subr.mxu0 0.0
  %113 = vmatpush2.msra.mxu0 0.0
  %114 = vmatprep.subr.mxu0 0.0
  %115 = vmatpush2.msra.mxu0 0.0
  %116 = vmatprep.subr.mxu0 0.0
  %117 = vmatpush2.msra.mxu0 0.0
  %118 = vmatprep.subr.mxu0 0.0
  %119 = vmatpush2.msra.mxu0 0.0
  %120 = vmatprep.subr.mxu0 0.0
  %121 = vmatpush2.msra.mxu0 0.0
  %122 = vmatprep.subr.mxu0 0.0
  %123 = vmatpush2.msra.mxu0 0.0
  %124 = vmatprep.subr.mxu0 0.0
  %125 = vmatpush2.msra.mxu0 0.0
  %126 = vmatprep.mubr.f32.mxu0 0.0
  %127 = vmatmul.mubr.f32.gmra.mxu0 %v41
  %v128 = vpop.f32.mrf.mxu0
  %v129 = vadd.f32 %v37, %v128
  %v130 = vpop.f32.mrf.mxu0
  %131 = vmatprep.mubr.f32.mxu0 0.0
  %132 = vmatmul.mubr.f32.gmra.mxu0 %v44
  %v133 = vpop.f32.mrf.mxu0
  %v134 = vadd.f32 %v37, %v133
  %v135 = vpop.f32.mrf.mxu0
  %136 = vmatprep.mubr.f32.mxu0 0.0
  %137 = vmatmul.mubr.f32.gmra.mxu0 %v47
  %v138 = vpop.f32.mrf.mxu0
  %v139 = vadd.f32 %v37, %v138
  %v140 = vpop.f32.mrf.mxu0
  %141 = vmatprep.mubr.f32.mxu0 0.0
  %142 = vmatmul.mubr.f32.gmra.mxu0 %v50
  %v143 = vpop.f32.mrf.mxu0
  %v144 = vadd.f32 %v37, %v143
  %v145 = vpop.f32.mrf.mxu0
  %146 = vmatprep.mubr.f32.mxu0 0.0
  %147 = vmatmul.mubr.f32.gmra.mxu0 %v53
  %v148 = vpop.f32.mrf.mxu0
  %v149 = vadd.f32 %v37, %v148
  %v150 = vpop.f32.mrf.mxu0
  %151 = vmatprep.mubr.f32.mxu0 0.0
  %152 = vmatmul.mubr.f32.gmra.mxu0 %v56
  %v153 = vpop.f32.mrf.mxu0
  %v154 = vadd.f32 %v37, %v153
  %v155 = vpop.f32.mrf.mxu0
  %156 = vdwg.mxu0
  %v157 = vmax.f32 %v129, 0.0
  %v158 = vmax.f32 %v134, 0.0
  %v159 = vmax.f32 %v139, 0.0
  %v160 = vmax.f32 %v144, 0.0
  %v161 = vmax.f32 %v149, 0.0
  %v162 = vmax.f32 %v154, 0.0
  %v163 = vld [vmem:[%s3] sm:$0xff]
  %v164 = vld [vmem:[%s3 + $0x8] sm:$0xff]
  %v165 = vld [vmem:[%s3 + $0x10] sm:$0xff]
  %v166 = vld [vmem:[%s3 + $0x18] sm:$0xff]
  %v167 = vld [vmem:[#allocation2] sm:$0x1]
  %v169 = vlaneseq
  %v170 = vshrl.u32 %v169, 7
  %v171 = vsub.s32 0, %v170
  %v172 = vrot.slane %v167, %v171
  %vm174 = vcmask 261120
  %v176 = vsel %vm174, %v157, 0
  %v179 = vsel %vm174, %v158, 0
  %v182 = vsel %vm174, %v159, 0
  %v185 = vsel %vm174, %v160, 0
  %v188 = vsel %vm174, %v161, 0
  %v191 = vsel %vm174, %v162, 0
  %193 = vmatprep.subr.mxu0 0.0
  %194 = vmatpush1.msra.mxu0 0.0
  %195 = vmatprep.subr.mxu0 0.0
  %196 = vmatpush1.msra.mxu0 0.0
  %197 = vmatprep.subr.mxu0 0.0
  %198 = vmatpush1.msra.mxu0 0.0
  %199 = vmatprep.subr.mxu0 0.0
  %200 = vmatpush1.msra.mxu0 0.0
  %201 = vmatprep.subr.mxu0 0.0
  %202 = vmatpush1.msra.mxu0 0.0
  %203 = vmatprep.subr.mxu0 0.0
  %204 = vmatpush1.msra.mxu0 0.0
  %205 = vmatprep.subr.mxu0 0.0
  %206 = vmatpush1.msra.mxu0 0.0
  %207 = vmatprep.subr.mxu0 0.0
  %208 = vmatpush1.msra.mxu0 0.0
  %209 = vmatprep.subr.mxu0 0.0
  %210 = vmatpush1.msra.mxu0 0.0
  %211 = vmatprep.subr.mxu0 0.0
  %212 = vmatpush1.msra.mxu0 0.0
  %213 = vmatprep.subr.mxu0 0.0
  %214 = vmatpush1.msra.mxu0 0.0
  %215 = vmatprep.subr.mxu0 0.0
  %216 = vmatpush1.msra.mxu0 0.0
  %217 = vmatprep.subr.mxu0 0.0
  %218 = vmatpush1.msra.mxu0 %v166
  %219 = vmatprep.subr.mxu0 0.0
  %220 = vmatpush1.msra.mxu0 %v165
  %221 = vmatprep.subr.mxu0 0.0
  %222 = vmatpush1.msra.mxu0 %v164
  %223 = vmatprep.subr.mxu0 0.0
  %224 = vmatpush1.msra.mxu0 %v163
  %225 = vmatprep.subr.mxu0 0.0
  %226 = vmatpush2.msra.mxu0 0.0
  %227 = vmatprep.subr.mxu0 0.0
  %228 = vmatpush2.msra.mxu0 0.0
  %229 = vmatprep.subr.mxu0 0.0
  %230 = vmatpush2.msra.mxu0 0.0
  %231 = vmatprep.subr.mxu0 0.0
  %232 = vmatpush2.msra.mxu0 0.0
  %233 = vmatprep.subr.mxu0 0.0
  %234 = vmatpush2.msra.mxu0 0.0
  %235 = vmatprep.subr.mxu0 0.0
  %236 = vmatpush2.msra.mxu0 0.0
  %237 = vmatprep.subr.mxu0 0.0
  %238 = vmatpush2.msra.mxu0 0.0
  %239 = vmatprep.subr.mxu0 0.0
  %240 = vmatpush2.msra.mxu0 0.0
  %241 = vmatprep.subr.mxu0 0.0
  %242 = vmatpush2.msra.mxu0 0.0
  %243 = vmatprep.subr.mxu0 0.0
  %244 = vmatpush2.msra.mxu0 0.0
  %245 = vmatprep.subr.mxu0 0.0
  %246 = vmatpush2.msra.mxu0 0.0
  %247 = vmatprep.subr.mxu0 0.0
  %248 = vmatpush2.msra.mxu0 0.0
  %249 = vmatprep.subr.mxu0 0.0
  %250 = vmatpush2.msra.mxu0 0.0
  %251 = vmatprep.subr.mxu0 0.0
  %252 = vmatpush2.msra.mxu0 0.0
  %253 = vmatprep.subr.mxu0 0.0
  %254 = vmatpush2.msra.mxu0 0.0
  %255 = vmatprep.subr.mxu0 0.0
  %256 = vmatpush2.msra.mxu0 0.0
  %257 = vmatprep.mubr.f32.mxu0 0.0
  %258 = vmatmul.mubr.f32.gmra.mxu0 %v176
  %v259 = vpop.f32.mrf.mxu0
  %v260 = vadd.f32 %v172, %v259
  %v261 = vpop.f32.mrf.mxu0
  %262 = vmatprep.mubr.f32.mxu0 0.0
  %263 = vmatmul.mubr.f32.gmra.mxu0 %v179
  %v264 = vpop.f32.mrf.mxu0
  %v265 = vadd.f32 %v172, %v264
  %v266 = vpop.f32.mrf.mxu0
  %267 = vmatprep.mubr.f32.mxu0 0.0
  %268 = vmatmul.mubr.f32.gmra.mxu0 %v182
  %v269 = vpop.f32.mrf.mxu0
  %v270 = vadd.f32 %v172, %v269
  %v271 = vpop.f32.mrf.mxu0
  %272 = vmatprep.mubr.f32.mxu0 0.0
  %273 = vmatmul.mubr.f32.gmra.mxu0 %v185
  %v274 = vpop.f32.mrf.mxu0
  %v275 = vadd.f32 %v172, %v274
  %v276 = vpop.f32.mrf.mxu0
  %277 = vmatprep.mubr.f32.mxu0 0.0
  %278 = vmatmul.mubr.f32.gmra.mxu0 %v188
  %v279 = vpop.f32.mrf.mxu0
  %v280 = vadd.f32 %v172, %v279
  %v281 = vpop.f32.mrf.mxu0
  %282 = vmatprep.mubr.f32.mxu0 0.0
  %283 = vmatmul.mubr.f32.gmra.mxu0 %v191
  %v284 = vpop.f32.mrf.mxu0
  %v285 = vadd.f32 %v172, %v284
  %v286 = vpop.f32.mrf.mxu0
  %287 = vdwg.mxu0
  %vm288 = vcmask 7168
  %289 = vst.msk [vmem:[%s5] sm:$0xff] %vm288, %v260
  %290 = vst.msk [vmem:[%s5 + $0x8] sm:$0xff] %vm288, %v265
  %291 = vst.msk [vmem:[%s5 + $0x10] sm:$0xff] %vm288, %v270
  %292 = vst.msk [vmem:[%s5 + $0x18] sm:$0xff] %vm288, %v275
  %293 = vst.msk [vmem:[%s5 + $0x20] sm:$0xff] %vm288, %v280
  %294 = vst.msk [vmem:[%s5 + $0x28] sm:$0xff] %vm288, %v285
  // Predicated region
  $region22: #{a_call__.6} parent=0 // pred_check
    _
  $region23: #{a_call__.6} parent=0 // pred_check_branch
    %296 = sbr.rel (0) target = $region25
  $region24: #{a_call__.6} parent=0 // pred_region
    _
  $region25: #{a_call__.6} parent=0 // pred_fallthru
    _
  // Predicated region
  $region26: #{a_call__.6} parent=0 // pred_check
    _
  $region27: #{a_call__.6} parent=0 // pred_check_branch
    %298 = sbr.rel (0) target = $region29
  $region28: #{a_call__.6} parent=0 // pred_region
    _
  $region29: #{a_call__.6} parent=0 // pred_fallthru
    _

// kernel: a_call__.7
$region0: #{a_call__.7}
  #allocation0 [shape = 'u32[]', space=smem, size = 0x4, offset = 0x4, fixed_abs, tag = 'smem constant byte address 0x4 - core index']
  #allocation1 [shape = 'u32[144,128]{1,0:T(1,128)}', space=vmem, size = 0x12000, scoped, tag = 'internal scratch']
  %s0 = inlined_call_operand.vmem [shape: f32[16,11], index: 0, kind: input, shape index: {}]
  %s1 = inlined_call_operand.vmem [shape: f32[11,32], index: 1, kind: input, shape index: {}]
  %s2 = inlined_call_operand.vmem [shape: f32[1,32], index: 2, kind: input, shape index: {}]
  %s3 = inlined_call_operand.vmem [shape: f32[32,8], index: 3, kind: input, shape index: {}]
  %s4 = inlined_call_operand.vmem [shape: f32[1,8], index: 4, kind: input, shape index: {}]
  %s5 = inlined_call_operand.vmem [shape: f32[16,8], index: 5, kind: output, shape index: {}]
  %s6 = sld [smem:[#allocation0]]
  $region30: #{a_call__.7} parent=0
    _
  %s8 = ssub.s32 1, %s6
  %s9 = scalar_select 0, %s8, %s6
  // Predicated region
  $region2: #{a_call__.7} parent=0 // pred_check
    _
  $region3: #{a_call__.7} parent=0 // pred_check_branch
    %11 = sbr.rel (0) target = $region5
  $region4: #{a_call__.7} parent=0 // pred_region
    _
  $region5: #{a_call__.7} parent=0 // pred_fallthru
    _
  // Predicated region
  $region6: #{a_call__.7} parent=0 // pred_check
    _
  $region7: #{a_call__.7} parent=0 // pred_check_branch
    %13 = sbr.rel (0) target = $region9
  $region8: #{a_call__.7} parent=0 // pred_region
    _
  $region9: #{a_call__.7} parent=0 // pred_fallthru
    _
  // Predicated region
  $region10: #{a_call__.7} parent=0 // pred_check
    _
  $region11: #{a_call__.7} parent=0 // pred_check_branch
    %15 = sbr.rel (0) target = $region13
  $region12: #{a_call__.7} parent=0 // pred_region
    _
  $region13: #{a_call__.7} parent=0 // pred_fallthru
    _
  // Predicated region
  $region14: #{a_call__.7} parent=0 // pred_check
    _
  $region15: #{a_call__.7} parent=0 // pred_check_branch
    %17 = sbr.rel (0) target = $region17
  $region16: #{a_call__.7} parent=0 // pred_region
    _
  $region17: #{a_call__.7} parent=0 // pred_fallthru
    _
  // Predicated region
  $region18: #{a_call__.7} parent=0 // pred_check
    _
  $region19: #{a_call__.7} parent=0 // pred_check_branch
    %19 = sbr.rel (0) target = $region21
  $region20: #{a_call__.7} parent=0 // pred_region
    _
  $region21: #{a_call__.7} parent=0 // pred_fallthru
    _
  %v20 = vld [vmem:[%s0] sm:$0xff]
  %v21 = vld [vmem:[%s0 + $0x8] sm:$0xff]
  %v22 = vld [vmem:[%s1] sm:$0xff]
  %v23 = vld [vmem:[%s1 + $0x8] sm:$0x7]
  %v24 = vld [vmem:[%s2] sm:$0x1]
  %v26 = vlaneseq
  %v27 = vshrl.u32 %v26, 7
  %v28 = vsub.s32 0, %v27
  %v29 = vrot.slane %v24, %v28
  %vm31 = vcmask 89088
  %v33 = vsel %vm31, %v20, 0
  %v36 = vsel %vm31, %v21, 0
  %vm38 = vcmask 1042432
  %v40 = vsel %vm38, %v23, 0
  %42 = vmatprep.subr.mxu0 0.0
  %43 = vmatpush1.msra.mxu0 0.0
  %44 = vmatprep.subr.mxu0 0.0
  %45 = vmatpush1.msra.mxu0 0.0
  %46 = vmatprep.subr.mxu0 0.0
  %47 = vmatpush1.msra.mxu0 0.0
  %48 = vmatprep.subr.mxu0 0.0
  %49 = vmatpush1.msra.mxu0 0.0
  %50 = vmatprep.subr.mxu0 0.0
  %51 = vmatpush1.msra.mxu0 0.0
  %52 = vmatprep.subr.mxu0 0.0
  %53 = vmatpush1.msra.mxu0 0.0
  %54 = vmatprep.subr.mxu0 0.0
  %55 = vmatpush1.msra.mxu0 0.0
  %56 = vmatprep.subr.mxu0 0.0
  %57 = vmatpush1.msra.mxu0 0.0
  %58 = vmatprep.subr.mxu0 0.0
  %59 = vmatpush1.msra.mxu0 0.0
  %60 = vmatprep.subr.mxu0 0.0
  %61 = vmatpush1.msra.mxu0 0.0
  %62 = vmatprep.subr.mxu0 0.0
  %63 = vmatpush1.msra.mxu0 0.0
  %64 = vmatprep.subr.mxu0 0.0
  %65 = vmatpush1.msra.mxu0 0.0
  %66 = vmatprep.subr.mxu0 0.0
  %67 = vmatpush1.msra.mxu0 0.0
  %68 = vmatprep.subr.mxu0 0.0
  %69 = vmatpush1.msra.mxu0 0.0
  %70 = vmatprep.subr.mxu0 0.0
  %71 = vmatpush1.msra.mxu0 %v40
  %72 = vmatprep.subr.mxu0 0.0
  %73 = vmatpush1.msra.mxu0 %v22
  %74 = vmatprep.subr.mxu0 0.0
  %75 = vmatpush2.msra.mxu0 0.0
  %76 = vmatprep.subr.mxu0 0.0
  %77 = vmatpush2.msra.mxu0 0.0
  %78 = vmatprep.subr.mxu0 0.0
  %79 = vmatpush2.msra.mxu0 0.0
  %80 = vmatprep.subr.mxu0 0.0
  %81 = vmatpush2.msra.mxu0 0.0
  %82 = vmatprep.subr.mxu0 0.0
  %83 = vmatpush2.msra.mxu0 0.0
  %84 = vmatprep.subr.mxu0 0.0
  %85 = vmatpush2.msra.mxu0 0.0
  %86 = vmatprep.subr.mxu0 0.0
  %87 = vmatpush2.msra.mxu0 0.0
  %88 = vmatprep.subr.mxu0 0.0
  %89 = vmatpush2.msra.mxu0 0.0
  %90 = vmatprep.subr.mxu0 0.0
  %91 = vmatpush2.msra.mxu0 0.0
  %92 = vmatprep.subr.mxu0 0.0
  %93 = vmatpush2.msra.mxu0 0.0
  %94 = vmatprep.subr.mxu0 0.0
  %95 = vmatpush2.msra.mxu0 0.0
  %96 = vmatprep.subr.mxu0 0.0
  %97 = vmatpush2.msra.mxu0 0.0
  %98 = vmatprep.subr.mxu0 0.0
  %99 = vmatpush2.msra.mxu0 0.0
  %100 = vmatprep.subr.mxu0 0.0
  %101 = vmatpush2.msra.mxu0 0.0
  %102 = vmatprep.subr.mxu0 0.0
  %103 = vmatpush2.msra.mxu0 0.0
  %104 = vmatprep.subr.mxu0 0.0
  %105 = vmatpush2.msra.mxu0 0.0
  %106 = vmatprep.mubr.f32.mxu0 0.0
  %107 = vmatmul.mubr.f32.gmra.mxu0 %v33
  %v108 = vpop.f32.mrf.mxu0
  %v109 = vadd.f32 %v29, %v108
  %v110 = vpop.f32.mrf.mxu0
  %111 = vmatprep.mubr.f32.mxu0 0.0
  %112 = vmatmul.mubr.f32.gmra.mxu0 %v36
  %v113 = vpop.f32.mrf.mxu0
  %v114 = vadd.f32 %v29, %v113
  %v115 = vpop.f32.mrf.mxu0
  %116 = vdwg.mxu0
  %v117 = vmax.f32 %v109, 0.0
  %v118 = vmax.f32 %v114, 0.0
  %v119 = vld [vmem:[%s3] sm:$0xff]
  %v120 = vld [vmem:[%s3 + $0x8] sm:$0xff]
  %v121 = vld [vmem:[%s3 + $0x10] sm:$0xff]
  %v122 = vld [vmem:[%s3 + $0x18] sm:$0xff]
  %v123 = vld [vmem:[%s4] sm:$0x1]
  %v125 = vlaneseq
  %v126 = vshrl.u32 %v125, 7
  %v127 = vsub.s32 0, %v126
  %v128 = vrot.slane %v123, %v127
  %vm130 = vcmask 261120
  %v132 = vsel %vm130, %v117, 0
  %v135 = vsel %vm130, %v118, 0
  %137 = vmatprep.subr.mxu0 0.0
  %138 = vmatpush1.msra.mxu0 0.0
  %139 = vmatprep.subr.mxu0 0.0
  %140 = vmatpush1.msra.mxu0 0.0
  %141 = vmatprep.subr.mxu0 0.0
  %142 = vmatpush1.msra.mxu0 0.0
  %143 = vmatprep.subr.mxu0 0.0
  %144 = vmatpush1.msra.mxu0 0.0
  %145 = vmatprep.subr.mxu0 0.0
  %146 = vmatpush1.msra.mxu0 0.0
  %147 = vmatprep.subr.mxu0 0.0
  %148 = vmatpush1.msra.mxu0 0.0
  %149 = vmatprep.subr.mxu0 0.0
  %150 = vmatpush1.msra.mxu0 0.0
  %151 = vmatprep.subr.mxu0 0.0
  %152 = vmatpush1.msra.mxu0 0.0
  %153 = vmatprep.subr.mxu0 0.0
  %154 = vmatpush1.msra.mxu0 0.0
  %155 = vmatprep.subr.mxu0 0.0
  %156 = vmatpush1.msra.mxu0 0.0
  %157 = vmatprep.subr.mxu0 0.0
  %158 = vmatpush1.msra.mxu0 0.0
  %159 = vmatprep.subr.mxu0 0.0
  %160 = vmatpush1.msra.mxu0 0.0
  %161 = vmatprep.subr.mxu0 0.0
  %162 = vmatpush1.msra.mxu0 %v122
  %163 = vmatprep.subr.mxu0 0.0
  %164 = vmatpush1.msra.mxu0 %v121
  %165 = vmatprep.subr.mxu0 0.0
  %166 = vmatpush1.msra.mxu0 %v120
  %167 = vmatprep.subr.mxu0 0.0
  %168 = vmatpush1.msra.mxu0 %v119
  %169 = vmatprep.subr.mxu0 0.0
  %170 = vmatpush2.msra.mxu0 0.0
  %171 = vmatprep.subr.mxu0 0.0
  %172 = vmatpush2.msra.mxu0 0.0
  %173 = vmatprep.subr.mxu0 0.0
  %174 = vmatpush2.msra.mxu0 0.0
  %175 = vmatprep.subr.mxu0 0.0
  %176 = vmatpush2.msra.mxu0 0.0
  %177 = vmatprep.subr.mxu0 0.0
  %178 = vmatpush2.msra.mxu0 0.0
  %179 = vmatprep.subr.mxu0 0.0
  %180 = vmatpush2.msra.mxu0 0.0
  %181 = vmatprep.subr.mxu0 0.0
  %182 = vmatpush2.msra.mxu0 0.0
  %183 = vmatprep.subr.mxu0 0.0
  %184 = vmatpush2.msra.mxu0 0.0
  %185 = vmatprep.subr.mxu0 0.0
  %186 = vmatpush2.msra.mxu0 0.0
  %187 = vmatprep.subr.mxu0 0.0
  %188 = vmatpush2.msra.mxu0 0.0
  %189 = vmatprep.subr.mxu0 0.0
  %190 = vmatpush2.msra.mxu0 0.0
  %191 = vmatprep.subr.mxu0 0.0
  %192 = vmatpush2.msra.mxu0 0.0
  %193 = vmatprep.subr.mxu0 0.0
  %194 = vmatpush2.msra.mxu0 0.0
  %195 = vmatprep.subr.mxu0 0.0
  %196 = vmatpush2.msra.mxu0 0.0
  %197 = vmatprep.subr.mxu0 0.0
  %198 = vmatpush2.msra.mxu0 0.0
  %199 = vmatprep.subr.mxu0 0.0
  %200 = vmatpush2.msra.mxu0 0.0
  %201 = vmatprep.mubr.f32.mxu0 0.0
  %202 = vmatmul.mubr.f32.gmra.mxu0 %v132
  %v203 = vpop.f32.mrf.mxu0
  %v204 = vadd.f32 %v128, %v203
  %v205 = vpop.f32.mrf.mxu0
  %206 = vmatprep.mubr.f32.mxu0 0.0
  %207 = vmatmul.mubr.f32.gmra.mxu0 %v135
  %v208 = vpop.f32.mrf.mxu0
  %v209 = vadd.f32 %v128, %v208
  %v210 = vpop.f32.mrf.mxu0
  %211 = vdwg.mxu0
  %vm212 = vcmask 64512
  %213 = vst.msk [vmem:[%s5] sm:$0xff] %vm212, %v204
  %214 = vst.msk [vmem:[%s5 + $0x8] sm:$0xff] %vm212, %v209
  // Predicated region
  $region22: #{a_call__.7} parent=0 // pred_check
    _
  $region23: #{a_call__.7} parent=0 // pred_check_branch
    %216 = sbr.rel (0) target = $region25
  $region24: #{a_call__.7} parent=0 // pred_region
    _
  $region25: #{a_call__.7} parent=0 // pred_fallthru
    _
  // Predicated region
  $region26: #{a_call__.7} parent=0 // pred_check
    _
  $region27: #{a_call__.7} parent=0 // pred_check_branch
    %218 = sbr.rel (0) target = $region29
  $region28: #{a_call__.7} parent=0 // pred_region
    _
  $region29: #{a_call__.7} parent=0 // pred_fallthru
    _

</llo_original>
